<compile_context>
chip_gen: v7x
topology: tpu7x:2x2x1
jax: 0.10.0
libtpu: 0.0.40
codegen_flags: <defaults>
</compile_context>

<pallas_src>
import functools
import math

import jax
import jax.numpy as jnp
from jax.experimental import pallas as pl
from jax.experimental.pallas import tpu as pltpu


def _vmem_limit_bytes():
    """75% of physical VMEM (capped at 100 MiB); safe on v5e/v6e/v7x."""
    try:
        cap = pltpu.get_tpu_info().vmem_capacity_bytes
    except Exception:
        cap = 64 * 1024 * 1024
    return min(int(cap * 3 // 4), 100 * 1024 * 1024)


def _pick_batch_tile(B, S):
    """Largest divisor bt of B with bt*S rows <= 512 and sublane-aligned."""
    candidates = [bt for bt in range(1, B + 1)
                  if B % bt == 0 and (bt * S) % 8 == 0 and bt * S <= 512]
    return max(candidates) if candidates else B


def encoder_layer_kernel(x_ref,
                         wqkv_ref, bqkv_ref,
                         wo_ref, bo_ref,
                         g1_ref, be1_ref,
                         w1_ref, b1_ref,
                         w2_ref, b2_ref,
                         g2_ref, be2_ref,
                         o_ref,
                         *, n_heads, seq_len, activation):
    x = x_ref[...].astype(jnp.float32)            # (R, D), R = bt * seq_len
    R, D = x.shape
    hd = D // n_heads
    n_b = R // seq_len

    def layer_norm(inp, g_ref, b_ref):
        mean = jnp.mean(inp, axis=-1, keepdims=True)
        var = jnp.mean((inp - mean) ** 2, axis=-1, keepdims=True)
        inv = jax.lax.rsqrt(var + 1e-5)
        return ((inp - mean) * inv * g_ref[...].astype(jnp.float32)
                + b_ref[...].astype(jnp.float32))

    # ---- fused QKV projection over all rows in the tile ----------------------
    # 1/sqrt(hd) is already folded into the Wq/bq columns (weight prep time).
    x_bf = x.astype(jnp.bfloat16)
    qkv = jnp.dot(x_bf, wqkv_ref[...], preferred_element_type=jnp.float32)
    qkv_bf = (qkv + bqkv_ref[...].astype(jnp.float32)).astype(jnp.bfloat16)

    # ---- attention: per batch element (static row slices), per head ----------
    ctx_rows = []
    for b in range(n_b):
        rows = slice(b * seq_len, (b + 1) * seq_len)
        ctx_heads = []
        for h in range(n_heads):
            qs = slice(h * hd, (h + 1) * hd)
            ks = slice(D + h * hd, D + (h + 1) * hd)
            vs = slice(2 * D + h * hd, 2 * D + (h + 1) * hd)
            qh = qkv_bf[rows, qs]                 # (S, hd) bf16
            kh = qkv_bf[rows, ks]
            vh = qkv_bf[rows, vs]
            # scores = qh @ kh^T via contraction on hd (no explicit transpose)
            s = jax.lax.dot_general(qh, kh, (((1,), (1,)), ((), ())),
                                    preferred_element_type=jnp.float32)  # (S, S)
            s = s - jnp.max(s, axis=-1, keepdims=True)
            p = jnp.exp(s)
            # approx reciprocal -> EUP slot; row sums are 1 +- ~2^-12
            p = p * pl.reciprocal(jnp.sum(p, axis=-1, keepdims=True), approx=True)
            ctx_heads.append(jnp.dot(p.astype(jnp.bfloat16), vh,
                                     preferred_element_type=jnp.float32))
        ctx_rows.append(jnp.concatenate(ctx_heads, axis=-1))   # (S, D)
    ctx_bf = jnp.concatenate(ctx_rows, axis=0).astype(jnp.bfloat16)  # (R, D)

    # ---- out projection + residual + LayerNorm --------------------------------
    attn_out = (jnp.dot(ctx_bf, wo_ref[...], preferred_element_type=jnp.float32)
                + bo_ref[...].astype(jnp.float32))
    x1 = x + attn_out                              # dropout = identity (inference)
    x1n = layer_norm(x1, g1_ref, be1_ref)          # self_attn_norm

    # ---- feed-forward block ----------------------------------------------------
    h_pre = (jnp.dot(x1n.astype(jnp.bfloat16), w1_ref[...],
                     preferred_element_type=jnp.float32)
             + b1_ref[...].astype(jnp.float32))
    if activation == 'relu':
        hh = jnp.maximum(h_pre, 0.0)
    else:  # 'gelu' (exact, matches torch.nn.functional.gelu default)
        hh = jax.nn.gelu(h_pre, approximate=False)
    ff = (jnp.dot(hh.astype(jnp.bfloat16), w2_ref[...],
                  preferred_element_type=jnp.float32)
          + b2_ref[...].astype(jnp.float32))

    x2 = layer_norm(x1n + ff, g2_ref, be2_ref)     # ff_norm
    o_ref[...] = x2.astype(o_ref.dtype)


def prepare_params(params, n_heads):
    """One-time weight prep (hoist out of the per-call path): fuse QKV,
    fold the 1/sqrt(head_dim) scale into Wq/bq, pre-transpose to (in, out),
    cast matmul weights to bf16.  Biases / LN params stay f32."""
    f32, bf16 = jnp.float32, jnp.bfloat16
    D = params['wq'].shape[0]
    scale = 1.0 / math.sqrt(D // n_heads)
    wqkv = jnp.concatenate([params['wq'] * scale, params['wk'], params['wv']],
                           axis=0).T.astype(bf16)                    # (D, 3D)
    bqkv = jnp.concatenate([params['bq'] * scale, params['bk'], params['bv']],
                           axis=-1).astype(f32)                      # (1, 3D)
    return dict(
        wqkv=wqkv, bqkv=bqkv,
        wo=params['wo'].T.astype(bf16), bo=params['bo'].astype(f32),
        g1=params['g1'].astype(f32), be1=params['be1'].astype(f32),
        w1=params['w1'].T.astype(bf16), b1=params['b1'].astype(f32),
        w2=params['w2'].T.astype(bf16), b2=params['b2'].astype(f32),
        g2=params['g2'].astype(f32), be2=params['be2'].astype(f32),
    )


def transformer_encoder_layer_bsd(x_bsd, prepped, n_heads, activation='relu'):
    """x_bsd: (B, S, D).  Preferred entry point for a multi-layer encoder
    (no per-layer (S,B,D)<->(B,S,D) transposes)."""
    B, S, D = x_bsd.shape
    bt = _pick_batch_tile(B, S)
    rows = bt * S
    x2d = x_bsd.reshape(B * S, D)

    keys = ('wqkv', 'bqkv', 'wo', 'bo', 'g1', 'be1',
            'w1', 'b1', 'w2', 'b2', 'g2', 'be2')
    const_args = [prepped[k] for k in keys]

    def full_spec(p):
        nd = p.ndim
        # constant block index -> fetched once, kept resident across the grid
        return pl.BlockSpec(p.shape, lambda i, _nd=nd: (0,) * _nd)

    in_specs = ([pl.BlockSpec((rows, D), lambda i: (i, 0))]
                + [full_spec(p) for p in const_args])

    out = pl.pallas_call(
        functools.partial(encoder_layer_kernel,
                          n_heads=n_heads, seq_len=S, activation=activation),
        out_shape=jax.ShapeDtypeStruct((B * S, D), x_bsd.dtype),
        grid=(B // bt,),
        in_specs=in_specs,
        out_specs=pl.BlockSpec((rows, D), lambda i: (i, 0)),
        compiler_params=pltpu.CompilerParams(
            dimension_semantics=("parallel",),
            vmem_limit_bytes=_vmem_limit_bytes()),
    )(x2d, *const_args)

    return out.reshape(B, S, D)


def transformer_encoder_layer(x_sbd, prepped, n_heads, activation='relu'):
    """PyTorch convention wrapper: x_sbd is (S, B, D).  For stacked layers,
    hoist this transpose to once per model and use the _bsd entry point."""
    out = transformer_encoder_layer_bsd(jnp.transpose(x_sbd, (1, 0, 2)),
                                        prepped, n_heads, activation)
    return jnp.transpose(out, (1, 0, 2))


def reference_layer(x_sbd, params, n_heads, activation='relu'):
    """Pure-JAX f32 reference of the same math (sanity check)."""
    S, B, D = x_sbd.shape
    hd = D // n_heads
    scale = 1.0 / math.sqrt(hd)
    x = jnp.transpose(x_sbd, (1, 0, 2))           # (B, S, D)

    def lin(inp, w, b):
        return inp @ w.T + b

    def ln(inp, g, b):
        m = jnp.mean(inp, -1, keepdims=True)
        v = jnp.mean((inp - m) ** 2, -1, keepdims=True)
        return (inp - m) * jax.lax.rsqrt(v + 1e-5) * g + b

    q = lin(x, params['wq'], params['bq']) * scale
    k = lin(x, params['wk'], params['bk'])
    v = lin(x, params['wv'], params['bv'])
    qh = q.reshape(B, S, n_heads, hd).transpose(0, 2, 1, 3)
    kh = k.reshape(B, S, n_heads, hd).transpose(0, 2, 1, 3)
    vh = v.reshape(B, S, n_heads, hd).transpose(0, 2, 1, 3)
    s = jnp.einsum('bhqd,bhkd->bhqk', qh, kh)
    p = jax.nn.softmax(s, axis=-1)
    ctx = jnp.einsum('bhqk,bhkd->bhqd', p, vh).transpose(0, 2, 1, 3).reshape(B, S, D)
    attn_out = lin(ctx, params['wo'], params['bo'])
    x1n = ln(x + attn_out, params['g1'], params['be1'])
    h = lin(x1n, params['w1'], params['b1'])
    h = jnp.maximum(h, 0.0) if activation == 'relu' else jax.nn.gelu(h, approximate=False)
    x2 = ln(x1n + lin(h, params['w2'], params['b2']), params['g2'], params['be2'])
    return jnp.transpose(x2, (1, 0, 2))


def init_params(key, dim, n_heads, ff_dim):
    ks = jax.random.split(key, 8)
    std = 0.02
    return {
        'wq': jax.random.normal(ks[0], (dim, dim), jnp.float32) * std,
        'bq': jnp.zeros((1, dim), jnp.float32),
        'wk': jax.random.normal(ks[1], (dim, dim), jnp.float32) * std,
        'bk': jnp.zeros((1, dim), jnp.float32),
        'wv': jax.random.normal(ks[2], (dim, dim), jnp.float32) * std,
        'bv': jnp.zeros((1, dim), jnp.float32),
        'wo': jax.random.normal(ks[3], (dim, dim), jnp.float32) * std,
        'bo': jax.random.normal(ks[4], (1, dim), jnp.float32) * std,
        'g1': jnp.ones((1, dim), jnp.float32),
        'be1': jnp.zeros((1, dim), jnp.float32),
        'w1': jax.random.normal(ks[5], (ff_dim, dim), jnp.float32) * std,
        'b1': jax.random.normal(ks[6], (1, ff_dim), jnp.float32) * std,
        'w2': jax.random.normal(ks[7], (dim, ff_dim), jnp.float32) * std,
        'b2': jnp.zeros((1, dim), jnp.float32),
        'g2': jnp.ones((1, dim), jnp.float32),
        'be2': jnp.zeros((1, dim), jnp.float32),
    }


if __name__ == "__main__":
    S, B, D, H, FF = 8, 2, 32, 4, 64   # seq, batch, dim, heads, ff_dim
    key = jax.random.PRNGKey(0)
    kx, kp = jax.random.split(key)
    x = jax.random.normal(kx, (S, B, D), dtype=jnp.float32)   # (seq, batch, dim)
    params = init_params(kp, D, H, FF)

    prepped = prepare_params(params, H)   # one-time weight prep (hoisted)

    out = transformer_encoder_layer(x, prepped, H, activation='relu')
    out = jax.block_until_ready(out)

    ref = reference_layer(x, params, H, activation='relu')
    assert out.shape == (S, B, D)
    assert bool(jnp.all(jnp.isfinite(out)))
    assert bool(jnp.allclose(out, ref, atol=5e-2, rtol=5e-2)), "mismatch vs reference"

    print("KERNEL_OK")
</pallas_src>

<mosaic_0001>
module attributes {stable_mosaic.version = 11 : i64} {
  func.func @encoder_layer_kernel(%arg0: i32, %arg1: memref<16x32xf32, #tpu.memory_space<vmem>>, %arg2: memref<32x96xbf16, #tpu.memory_space<vmem>>, %arg3: memref<1x96xf32, #tpu.memory_space<vmem>>, %arg4: memref<32x32xbf16, #tpu.memory_space<vmem>>, %arg5: memref<1x32xf32, #tpu.memory_space<vmem>>, %arg6: memref<1x32xf32, #tpu.memory_space<vmem>>, %arg7: memref<1x32xf32, #tpu.memory_space<vmem>>, %arg8: memref<32x64xbf16, #tpu.memory_space<vmem>>, %arg9: memref<1x64xf32, #tpu.memory_space<vmem>>, %arg10: memref<64x32xbf16, #tpu.memory_space<vmem>>, %arg11: memref<1x32xf32, #tpu.memory_space<vmem>>, %arg12: memref<1x32xf32, #tpu.memory_space<vmem>>, %arg13: memref<1x32xf32, #tpu.memory_space<vmem>>, %arg14: memref<16x32xf32, #tpu.memory_space<vmem>>) attributes {dimension_semantics = [#tpu.dimension_semantics<parallel>], iteration_bounds = array<i64: 1>, scalar_prefetch = 0 : i64, scratch_operands = 0 : i64, tpu.core_type = #tpu.core_type<tc>, window_params = [{transform_indices = @transform_0, window_bounds = array<i64: 16, 32>}, {pipeline_mode = #tpu.pipeline_mode<synchronous>, transform_indices = @transform_1, window_bounds = array<i64: 32, 96>}, {pipeline_mode = #tpu.pipeline_mode<synchronous>, transform_indices = @transform_2, window_bounds = array<i64: 1, 96>}, {pipeline_mode = #tpu.pipeline_mode<synchronous>, transform_indices = @transform_3, window_bounds = array<i64: 32, 32>}, {pipeline_mode = #tpu.pipeline_mode<synchronous>, transform_indices = @transform_4, window_bounds = array<i64: 1, 32>}, {pipeline_mode = #tpu.pipeline_mode<synchronous>, transform_indices = @transform_5, window_bounds = array<i64: 1, 32>}, {pipeline_mode = #tpu.pipeline_mode<synchronous>, transform_indices = @transform_6, window_bounds = array<i64: 1, 32>}, {pipeline_mode = #tpu.pipeline_mode<synchronous>, transform_indices = @transform_7, window_bounds = array<i64: 32, 64>}, {pipeline_mode = #tpu.pipeline_mode<synchronous>, transform_indices = @transform_8, window_bounds = array<i64: 1, 64>}, {pipeline_mode = #tpu.pipeline_mode<synchronous>, transform_indices = @transform_9, window_bounds = array<i64: 64, 32>}, {pipeline_mode = #tpu.pipeline_mode<synchronous>, transform_indices = @transform_10, window_bounds = array<i64: 1, 32>}, {pipeline_mode = #tpu.pipeline_mode<synchronous>, transform_indices = @transform_11, window_bounds = array<i64: 1, 32>}, {pipeline_mode = #tpu.pipeline_mode<synchronous>, transform_indices = @transform_12, window_bounds = array<i64: 1, 32>}, {transform_indices = @transform_13, window_bounds = array<i64: 16, 32>}]} {
    %c0 = arith.constant 0 : index
    %c0_0 = arith.constant 0 : index
    %0 = vector.load %arg1[%c0, %c0_0] : memref<16x32xf32, #tpu.memory_space<vmem>>, vector<16x32xf32>
    %1 = arith.truncf %0 : vector<16x32xf32> to vector<16x32xbf16>
    %c0_1 = arith.constant 0 : index
    %c0_2 = arith.constant 0 : index
    %2 = vector.load %arg2[%c0_1, %c0_2] : memref<32x96xbf16, #tpu.memory_space<vmem>>, vector<32x96xbf16>
    %cst = arith.constant dense<0.000000e+00> : vector<16x96xf32>
    %3 = tpu.matmul %1, %2, %cst {dimension_numbers = #tpu.dot_dimension_numbers<[1], [0], [0], [1], [0, 0, 1, 1], [], []>} : vector<16x32xbf16>, vector<32x96xbf16>, vector<16x96xf32> -> vector<16x96xf32>
    %c0_3 = arith.constant 0 : index
    %c0_4 = arith.constant 0 : index
    %4 = vector.load %arg3[%c0_3, %c0_4] : memref<1x96xf32, #tpu.memory_space<vmem>>, vector<1x96xf32>
    %5 = vector.broadcast %4 : vector<1x96xf32> to vector<16x96xf32>
    %6 = arith.addf %3, %5 : vector<16x96xf32>
    %7 = arith.truncf %6 : vector<16x96xf32> to vector<16x96xbf16>
    %8 = vector.extract_strided_slice %7 {offsets = [0, 0], sizes = [8, 8], strides = [1, 1]} : vector<16x96xbf16> to vector<8x8xbf16>
    %9 = vector.extract_strided_slice %7 {offsets = [0, 32], sizes = [8, 8], strides = [1, 1]} : vector<16x96xbf16> to vector<8x8xbf16>
    %10 = vector.extract_strided_slice %7 {offsets = [0, 64], sizes = [8, 8], strides = [1, 1]} : vector<16x96xbf16> to vector<8x8xbf16>
    %cst_5 = arith.constant dense<0.000000e+00> : vector<8x8xf32>
    %11 = tpu.matmul %8, %9, %cst_5 {dimension_numbers = #tpu.dot_dimension_numbers<[1], [1], [0], [0], [0, 0, 1, 0], [], []>} : vector<8x8xbf16>, vector<8x8xbf16>, vector<8x8xf32> -> vector<8x8xf32>
    %cst_6 = arith.constant dense<0xFF800000> : vector<8xf32>
    %12 = vector.multi_reduction <maximumf>, %11, %cst_6 [1] : vector<8x8xf32> to vector<8xf32>
    %13 = vector.shape_cast %12 : vector<8xf32> to vector<8x1xf32>
    %14 = vector.broadcast %13 : vector<8x1xf32> to vector<8x8xf32>
    %15 = arith.subf %11, %14 : vector<8x8xf32>
    %16 = math.exp %15 : vector<8x8xf32>
    %cst_7 = arith.constant dense<0.000000e+00> : vector<8xf32>
    %17 = vector.multi_reduction <add>, %16, %cst_7 [1] : vector<8x8xf32> to vector<8xf32>
    %18 = vector.shape_cast %17 : vector<8xf32> to vector<8x1xf32>
    %19 = tpu.reciprocal %18 {approx = true} : vector<8x1xf32> -> vector<8x1xf32>
    %20 = vector.broadcast %19 : vector<8x1xf32> to vector<8x8xf32>
    %21 = arith.mulf %16, %20 : vector<8x8xf32>
    %22 = arith.truncf %21 : vector<8x8xf32> to vector<8x8xbf16>
    %cst_8 = arith.constant dense<0.000000e+00> : vector<8x8xf32>
    %23 = tpu.matmul %22, %10, %cst_8 {dimension_numbers = #tpu.dot_dimension_numbers<[1], [0], [0], [1], [0, 0, 1, 1], [], []>} : vector<8x8xbf16>, vector<8x8xbf16>, vector<8x8xf32> -> vector<8x8xf32>
    %24 = vector.extract_strided_slice %7 {offsets = [0, 8], sizes = [8, 8], strides = [1, 1]} : vector<16x96xbf16> to vector<8x8xbf16>
    %25 = vector.extract_strided_slice %7 {offsets = [0, 40], sizes = [8, 8], strides = [1, 1]} : vector<16x96xbf16> to vector<8x8xbf16>
    %26 = vector.extract_strided_slice %7 {offsets = [0, 72], sizes = [8, 8], strides = [1, 1]} : vector<16x96xbf16> to vector<8x8xbf16>
    %cst_9 = arith.constant dense<0.000000e+00> : vector<8x8xf32>
    %27 = tpu.matmul %24, %25, %cst_9 {dimension_numbers = #tpu.dot_dimension_numbers<[1], [1], [0], [0], [0, 0, 1, 0], [], []>} : vector<8x8xbf16>, vector<8x8xbf16>, vector<8x8xf32> -> vector<8x8xf32>
    %cst_10 = arith.constant dense<0xFF800000> : vector<8xf32>
    %28 = vector.multi_reduction <maximumf>, %27, %cst_10 [1] : vector<8x8xf32> to vector<8xf32>
    %29 = vector.shape_cast %28 : vector<8xf32> to vector<8x1xf32>
    %30 = vector.broadcast %29 : vector<8x1xf32> to vector<8x8xf32>
    %31 = arith.subf %27, %30 : vector<8x8xf32>
    %32 = math.exp %31 : vector<8x8xf32>
    %cst_11 = arith.constant dense<0.000000e+00> : vector<8xf32>
    %33 = vector.multi_reduction <add>, %32, %cst_11 [1] : vector<8x8xf32> to vector<8xf32>
    %34 = vector.shape_cast %33 : vector<8xf32> to vector<8x1xf32>
    %35 = tpu.reciprocal %34 {approx = true} : vector<8x1xf32> -> vector<8x1xf32>
    %36 = vector.broadcast %35 : vector<8x1xf32> to vector<8x8xf32>
    %37 = arith.mulf %32, %36 : vector<8x8xf32>
    %38 = arith.truncf %37 : vector<8x8xf32> to vector<8x8xbf16>
    %cst_12 = arith.constant dense<0.000000e+00> : vector<8x8xf32>
    %39 = tpu.matmul %38, %26, %cst_12 {dimension_numbers = #tpu.dot_dimension_numbers<[1], [0], [0], [1], [0, 0, 1, 1], [], []>} : vector<8x8xbf16>, vector<8x8xbf16>, vector<8x8xf32> -> vector<8x8xf32>
    %40 = vector.extract_strided_slice %7 {offsets = [0, 16], sizes = [8, 8], strides = [1, 1]} : vector<16x96xbf16> to vector<8x8xbf16>
    %41 = vector.extract_strided_slice %7 {offsets = [0, 48], sizes = [8, 8], strides = [1, 1]} : vector<16x96xbf16> to vector<8x8xbf16>
    %42 = vector.extract_strided_slice %7 {offsets = [0, 80], sizes = [8, 8], strides = [1, 1]} : vector<16x96xbf16> to vector<8x8xbf16>
    %cst_13 = arith.constant dense<0.000000e+00> : vector<8x8xf32>
    %43 = tpu.matmul %40, %41, %cst_13 {dimension_numbers = #tpu.dot_dimension_numbers<[1], [1], [0], [0], [0, 0, 1, 0], [], []>} : vector<8x8xbf16>, vector<8x8xbf16>, vector<8x8xf32> -> vector<8x8xf32>
    %cst_14 = arith.constant dense<0xFF800000> : vector<8xf32>
    %44 = vector.multi_reduction <maximumf>, %43, %cst_14 [1] : vector<8x8xf32> to vector<8xf32>
    %45 = vector.shape_cast %44 : vector<8xf32> to vector<8x1xf32>
    %46 = vector.broadcast %45 : vector<8x1xf32> to vector<8x8xf32>
    %47 = arith.subf %43, %46 : vector<8x8xf32>
    %48 = math.exp %47 : vector<8x8xf32>
    %cst_15 = arith.constant dense<0.000000e+00> : vector<8xf32>
    %49 = vector.multi_reduction <add>, %48, %cst_15 [1] : vector<8x8xf32> to vector<8xf32>
    %50 = vector.shape_cast %49 : vector<8xf32> to vector<8x1xf32>
    %51 = tpu.reciprocal %50 {approx = true} : vector<8x1xf32> -> vector<8x1xf32>
    %52 = vector.broadcast %51 : vector<8x1xf32> to vector<8x8xf32>
    %53 = arith.mulf %48, %52 : vector<8x8xf32>
    %54 = arith.truncf %53 : vector<8x8xf32> to vector<8x8xbf16>
    %cst_16 = arith.constant dense<0.000000e+00> : vector<8x8xf32>
    %55 = tpu.matmul %54, %42, %cst_16 {dimension_numbers = #tpu.dot_dimension_numbers<[1], [0], [0], [1], [0, 0, 1, 1], [], []>} : vector<8x8xbf16>, vector<8x8xbf16>, vector<8x8xf32> -> vector<8x8xf32>
    %56 = vector.extract_strided_slice %7 {offsets = [0, 24], sizes = [8, 8], strides = [1, 1]} : vector<16x96xbf16> to vector<8x8xbf16>
    %57 = vector.extract_strided_slice %7 {offsets = [0, 56], sizes = [8, 8], strides = [1, 1]} : vector<16x96xbf16> to vector<8x8xbf16>
    %58 = vector.extract_strided_slice %7 {offsets = [0, 88], sizes = [8, 8], strides = [1, 1]} : vector<16x96xbf16> to vector<8x8xbf16>
    %cst_17 = arith.constant dense<0.000000e+00> : vector<8x8xf32>
    %59 = tpu.matmul %56, %57, %cst_17 {dimension_numbers = #tpu.dot_dimension_numbers<[1], [1], [0], [0], [0, 0, 1, 0], [], []>} : vector<8x8xbf16>, vector<8x8xbf16>, vector<8x8xf32> -> vector<8x8xf32>
    %cst_18 = arith.constant dense<0xFF800000> : vector<8xf32>
    %60 = vector.multi_reduction <maximumf>, %59, %cst_18 [1] : vector<8x8xf32> to vector<8xf32>
    %61 = vector.shape_cast %60 : vector<8xf32> to vector<8x1xf32>
    %62 = vector.broadcast %61 : vector<8x1xf32> to vector<8x8xf32>
    %63 = arith.subf %59, %62 : vector<8x8xf32>
    %64 = math.exp %63 : vector<8x8xf32>
    %cst_19 = arith.constant dense<0.000000e+00> : vector<8xf32>
    %65 = vector.multi_reduction <add>, %64, %cst_19 [1] : vector<8x8xf32> to vector<8xf32>
    %66 = vector.shape_cast %65 : vector<8xf32> to vector<8x1xf32>
    %67 = tpu.reciprocal %66 {approx = true} : vector<8x1xf32> -> vector<8x1xf32>
    %68 = vector.broadcast %67 : vector<8x1xf32> to vector<8x8xf32>
    %69 = arith.mulf %64, %68 : vector<8x8xf32>
    %70 = arith.truncf %69 : vector<8x8xf32> to vector<8x8xbf16>
    %cst_20 = arith.constant dense<0.000000e+00> : vector<8x8xf32>
    %71 = tpu.matmul %70, %58, %cst_20 {dimension_numbers = #tpu.dot_dimension_numbers<[1], [0], [0], [1], [0, 0, 1, 1], [], []>} : vector<8x8xbf16>, vector<8x8xbf16>, vector<8x8xf32> -> vector<8x8xf32>
    %72 = tpu.concatenate %23, %39, %55, %71 in 1 : vector<8x8xf32>, vector<8x8xf32>, vector<8x8xf32>, vector<8x8xf32> -> vector<8x32xf32>
    %73 = vector.extract_strided_slice %7 {offsets = [8, 0], sizes = [8, 8], strides = [1, 1]} : vector<16x96xbf16> to vector<8x8xbf16>
    %74 = vector.extract_strided_slice %7 {offsets = [8, 32], sizes = [8, 8], strides = [1, 1]} : vector<16x96xbf16> to vector<8x8xbf16>
    %75 = vector.extract_strided_slice %7 {offsets = [8, 64], sizes = [8, 8], strides = [1, 1]} : vector<16x96xbf16> to vector<8x8xbf16>
    %cst_21 = arith.constant dense<0.000000e+00> : vector<8x8xf32>
    %76 = tpu.matmul %73, %74, %cst_21 {dimension_numbers = #tpu.dot_dimension_numbers<[1], [1], [0], [0], [0, 0, 1, 0], [], []>} : vector<8x8xbf16>, vector<8x8xbf16>, vector<8x8xf32> -> vector<8x8xf32>
    %cst_22 = arith.constant dense<0xFF800000> : vector<8xf32>
    %77 = vector.multi_reduction <maximumf>, %76, %cst_22 [1] : vector<8x8xf32> to vector<8xf32>
    %78 = vector.shape_cast %77 : vector<8xf32> to vector<8x1xf32>
    %79 = vector.broadcast %78 : vector<8x1xf32> to vector<8x8xf32>
    %80 = arith.subf %76, %79 : vector<8x8xf32>
    %81 = math.exp %80 : vector<8x8xf32>
    %cst_23 = arith.constant dense<0.000000e+00> : vector<8xf32>
    %82 = vector.multi_reduction <add>, %81, %cst_23 [1] : vector<8x8xf32> to vector<8xf32>
    %83 = vector.shape_cast %82 : vector<8xf32> to vector<8x1xf32>
    %84 = tpu.reciprocal %83 {approx = true} : vector<8x1xf32> -> vector<8x1xf32>
    %85 = vector.broadcast %84 : vector<8x1xf32> to vector<8x8xf32>
    %86 = arith.mulf %81, %85 : vector<8x8xf32>
    %87 = arith.truncf %86 : vector<8x8xf32> to vector<8x8xbf16>
    %cst_24 = arith.constant dense<0.000000e+00> : vector<8x8xf32>
    %88 = tpu.matmul %87, %75, %cst_24 {dimension_numbers = #tpu.dot_dimension_numbers<[1], [0], [0], [1], [0, 0, 1, 1], [], []>} : vector<8x8xbf16>, vector<8x8xbf16>, vector<8x8xf32> -> vector<8x8xf32>
    %89 = vector.extract_strided_slice %7 {offsets = [8, 8], sizes = [8, 8], strides = [1, 1]} : vector<16x96xbf16> to vector<8x8xbf16>
    %90 = vector.extract_strided_slice %7 {offsets = [8, 40], sizes = [8, 8], strides = [1, 1]} : vector<16x96xbf16> to vector<8x8xbf16>
    %91 = vector.extract_strided_slice %7 {offsets = [8, 72], sizes = [8, 8], strides = [1, 1]} : vector<16x96xbf16> to vector<8x8xbf16>
    %cst_25 = arith.constant dense<0.000000e+00> : vector<8x8xf32>
    %92 = tpu.matmul %89, %90, %cst_25 {dimension_numbers = #tpu.dot_dimension_numbers<[1], [1], [0], [0], [0, 0, 1, 0], [], []>} : vector<8x8xbf16>, vector<8x8xbf16>, vector<8x8xf32> -> vector<8x8xf32>
    %cst_26 = arith.constant dense<0xFF800000> : vector<8xf32>
    %93 = vector.multi_reduction <maximumf>, %92, %cst_26 [1] : vector<8x8xf32> to vector<8xf32>
    %94 = vector.shape_cast %93 : vector<8xf32> to vector<8x1xf32>
    %95 = vector.broadcast %94 : vector<8x1xf32> to vector<8x8xf32>
    %96 = arith.subf %92, %95 : vector<8x8xf32>
    %97 = math.exp %96 : vector<8x8xf32>
    %cst_27 = arith.constant dense<0.000000e+00> : vector<8xf32>
    %98 = vector.multi_reduction <add>, %97, %cst_27 [1] : vector<8x8xf32> to vector<8xf32>
    %99 = vector.shape_cast %98 : vector<8xf32> to vector<8x1xf32>
    %100 = tpu.reciprocal %99 {approx = true} : vector<8x1xf32> -> vector<8x1xf32>
    %101 = vector.broadcast %100 : vector<8x1xf32> to vector<8x8xf32>
    %102 = arith.mulf %97, %101 : vector<8x8xf32>
    %103 = arith.truncf %102 : vector<8x8xf32> to vector<8x8xbf16>
    %cst_28 = arith.constant dense<0.000000e+00> : vector<8x8xf32>
    %104 = tpu.matmul %103, %91, %cst_28 {dimension_numbers = #tpu.dot_dimension_numbers<[1], [0], [0], [1], [0, 0, 1, 1], [], []>} : vector<8x8xbf16>, vector<8x8xbf16>, vector<8x8xf32> -> vector<8x8xf32>
    %105 = vector.extract_strided_slice %7 {offsets = [8, 16], sizes = [8, 8], strides = [1, 1]} : vector<16x96xbf16> to vector<8x8xbf16>
    %106 = vector.extract_strided_slice %7 {offsets = [8, 48], sizes = [8, 8], strides = [1, 1]} : vector<16x96xbf16> to vector<8x8xbf16>
    %107 = vector.extract_strided_slice %7 {offsets = [8, 80], sizes = [8, 8], strides = [1, 1]} : vector<16x96xbf16> to vector<8x8xbf16>
    %cst_29 = arith.constant dense<0.000000e+00> : vector<8x8xf32>
    %108 = tpu.matmul %105, %106, %cst_29 {dimension_numbers = #tpu.dot_dimension_numbers<[1], [1], [0], [0], [0, 0, 1, 0], [], []>} : vector<8x8xbf16>, vector<8x8xbf16>, vector<8x8xf32> -> vector<8x8xf32>
    %cst_30 = arith.constant dense<0xFF800000> : vector<8xf32>
    %109 = vector.multi_reduction <maximumf>, %108, %cst_30 [1] : vector<8x8xf32> to vector<8xf32>
    %110 = vector.shape_cast %109 : vector<8xf32> to vector<8x1xf32>
    %111 = vector.broadcast %110 : vector<8x1xf32> to vector<8x8xf32>
    %112 = arith.subf %108, %111 : vector<8x8xf32>
    %113 = math.exp %112 : vector<8x8xf32>
    %cst_31 = arith.constant dense<0.000000e+00> : vector<8xf32>
    %114 = vector.multi_reduction <add>, %113, %cst_31 [1] : vector<8x8xf32> to vector<8xf32>
    %115 = vector.shape_cast %114 : vector<8xf32> to vector<8x1xf32>
    %116 = tpu.reciprocal %115 {approx = true} : vector<8x1xf32> -> vector<8x1xf32>
    %117 = vector.broadcast %116 : vector<8x1xf32> to vector<8x8xf32>
    %118 = arith.mulf %113, %117 : vector<8x8xf32>
    %119 = arith.truncf %118 : vector<8x8xf32> to vector<8x8xbf16>
    %cst_32 = arith.constant dense<0.000000e+00> : vector<8x8xf32>
    %120 = tpu.matmul %119, %107, %cst_32 {dimension_numbers = #tpu.dot_dimension_numbers<[1], [0], [0], [1], [0, 0, 1, 1], [], []>} : vector<8x8xbf16>, vector<8x8xbf16>, vector<8x8xf32> -> vector<8x8xf32>
    %121 = vector.extract_strided_slice %7 {offsets = [8, 24], sizes = [8, 8], strides = [1, 1]} : vector<16x96xbf16> to vector<8x8xbf16>
    %122 = vector.extract_strided_slice %7 {offsets = [8, 56], sizes = [8, 8], strides = [1, 1]} : vector<16x96xbf16> to vector<8x8xbf16>
    %123 = vector.extract_strided_slice %7 {offsets = [8, 88], sizes = [8, 8], strides = [1, 1]} : vector<16x96xbf16> to vector<8x8xbf16>
    %cst_33 = arith.constant dense<0.000000e+00> : vector<8x8xf32>
    %124 = tpu.matmul %121, %122, %cst_33 {dimension_numbers = #tpu.dot_dimension_numbers<[1], [1], [0], [0], [0, 0, 1, 0], [], []>} : vector<8x8xbf16>, vector<8x8xbf16>, vector<8x8xf32> -> vector<8x8xf32>
    %cst_34 = arith.constant dense<0xFF800000> : vector<8xf32>
    %125 = vector.multi_reduction <maximumf>, %124, %cst_34 [1] : vector<8x8xf32> to vector<8xf32>
    %126 = vector.shape_cast %125 : vector<8xf32> to vector<8x1xf32>
    %127 = vector.broadcast %126 : vector<8x1xf32> to vector<8x8xf32>
    %128 = arith.subf %124, %127 : vector<8x8xf32>
    %129 = math.exp %128 : vector<8x8xf32>
    %cst_35 = arith.constant dense<0.000000e+00> : vector<8xf32>
    %130 = vector.multi_reduction <add>, %129, %cst_35 [1] : vector<8x8xf32> to vector<8xf32>
    %131 = vector.shape_cast %130 : vector<8xf32> to vector<8x1xf32>
    %132 = tpu.reciprocal %131 {approx = true} : vector<8x1xf32> -> vector<8x1xf32>
    %133 = vector.broadcast %132 : vector<8x1xf32> to vector<8x8xf32>
    %134 = arith.mulf %129, %133 : vector<8x8xf32>
    %135 = arith.truncf %134 : vector<8x8xf32> to vector<8x8xbf16>
    %cst_36 = arith.constant dense<0.000000e+00> : vector<8x8xf32>
    %136 = tpu.matmul %135, %123, %cst_36 {dimension_numbers = #tpu.dot_dimension_numbers<[1], [0], [0], [1], [0, 0, 1, 1], [], []>} : vector<8x8xbf16>, vector<8x8xbf16>, vector<8x8xf32> -> vector<8x8xf32>
    %137 = tpu.concatenate %88, %104, %120, %136 in 1 : vector<8x8xf32>, vector<8x8xf32>, vector<8x8xf32>, vector<8x8xf32> -> vector<8x32xf32>
    %138 = tpu.concatenate %72, %137 in 0 : vector<8x32xf32>, vector<8x32xf32> -> vector<16x32xf32>
    %139 = arith.truncf %138 : vector<16x32xf32> to vector<16x32xbf16>
    %c0_37 = arith.constant 0 : index
    %c0_38 = arith.constant 0 : index
    %140 = vector.load %arg4[%c0_37, %c0_38] : memref<32x32xbf16, #tpu.memory_space<vmem>>, vector<32x32xbf16>
    %cst_39 = arith.constant dense<0.000000e+00> : vector<16x32xf32>
    %141 = tpu.matmul %139, %140, %cst_39 {dimension_numbers = #tpu.dot_dimension_numbers<[1], [0], [0], [1], [0, 0, 1, 1], [], []>} : vector<16x32xbf16>, vector<32x32xbf16>, vector<16x32xf32> -> vector<16x32xf32>
    %c0_40 = arith.constant 0 : index
    %c0_41 = arith.constant 0 : index
    %142 = vector.load %arg5[%c0_40, %c0_41] : memref<1x32xf32, #tpu.memory_space<vmem>>, vector<1x32xf32>
    %143 = vector.broadcast %142 : vector<1x32xf32> to vector<16x32xf32>
    %144 = arith.addf %141, %143 : vector<16x32xf32>
    %145 = arith.addf %0, %144 : vector<16x32xf32>
    %cst_42 = arith.constant dense<0.000000e+00> : vector<16xf32>
    %146 = vector.multi_reduction <add>, %145, %cst_42 [1] : vector<16x32xf32> to vector<16xf32>
    %147 = vector.shape_cast %146 : vector<16xf32> to vector<16x1xf32>
    %cst_43 = arith.constant 3.200000e+01 : f32
    %148 = vector.broadcast %cst_43 : f32 to vector<16x1xf32>
    %149 = arith.divf %147, %148 : vector<16x1xf32>
    %150 = vector.broadcast %149 : vector<16x1xf32> to vector<16x32xf32>
    %151 = arith.subf %145, %150 : vector<16x32xf32>
    %152 = arith.mulf %151, %151 : vector<16x32xf32>
    %cst_44 = arith.constant dense<0.000000e+00> : vector<16xf32>
    %153 = vector.multi_reduction <add>, %152, %cst_44 [1] : vector<16x32xf32> to vector<16xf32>
    %154 = vector.shape_cast %153 : vector<16xf32> to vector<16x1xf32>
    %cst_45 = arith.constant 3.200000e+01 : f32
    %155 = vector.broadcast %cst_45 : f32 to vector<16x1xf32>
    %156 = arith.divf %154, %155 : vector<16x1xf32>
    %cst_46 = arith.constant 9.99999974E-6 : f32
    %157 = vector.broadcast %cst_46 : f32 to vector<16x1xf32>
    %158 = arith.addf %156, %157 : vector<16x1xf32>
    %159 = math.rsqrt %158 : vector<16x1xf32>
    %160 = vector.broadcast %149 : vector<16x1xf32> to vector<16x32xf32>
    %161 = arith.subf %145, %160 : vector<16x32xf32>
    %162 = vector.broadcast %159 : vector<16x1xf32> to vector<16x32xf32>
    %163 = arith.mulf %161, %162 : vector<16x32xf32>
    %c0_47 = arith.constant 0 : index
    %c0_48 = arith.constant 0 : index
    %164 = vector.load %arg6[%c0_47, %c0_48] : memref<1x32xf32, #tpu.memory_space<vmem>>, vector<1x32xf32>
    %165 = vector.broadcast %164 : vector<1x32xf32> to vector<16x32xf32>
    %166 = arith.mulf %163, %165 : vector<16x32xf32>
    %c0_49 = arith.constant 0 : index
    %c0_50 = arith.constant 0 : index
    %167 = vector.load %arg7[%c0_49, %c0_50] : memref<1x32xf32, #tpu.memory_space<vmem>>, vector<1x32xf32>
    %168 = vector.broadcast %167 : vector<1x32xf32> to vector<16x32xf32>
    %169 = arith.addf %166, %168 : vector<16x32xf32>
    %170 = arith.truncf %169 : vector<16x32xf32> to vector<16x32xbf16>
    %c0_51 = arith.constant 0 : index
    %c0_52 = arith.constant 0 : index
    %171 = vector.load %arg8[%c0_51, %c0_52] : memref<32x64xbf16, #tpu.memory_space<vmem>>, vector<32x64xbf16>
    %cst_53 = arith.constant dense<0.000000e+00> : vector<16x64xf32>
    %172 = tpu.matmul %170, %171, %cst_53 {dimension_numbers = #tpu.dot_dimension_numbers<[1], [0], [0], [1], [0, 0, 1, 1], [], []>} : vector<16x32xbf16>, vector<32x64xbf16>, vector<16x64xf32> -> vector<16x64xf32>
    %c0_54 = arith.constant 0 : index
    %c0_55 = arith.constant 0 : index
    %173 = vector.load %arg9[%c0_54, %c0_55] : memref<1x64xf32, #tpu.memory_space<vmem>>, vector<1x64xf32>
    %174 = vector.broadcast %173 : vector<1x64xf32> to vector<16x64xf32>
    %175 = arith.addf %172, %174 : vector<16x64xf32>
    %cst_56 = arith.constant 0.000000e+00 : f32
    %176 = vector.broadcast %cst_56 : f32 to vector<16x64xf32>
    %177 = arith.maximumf %175, %176 : vector<16x64xf32>
    %178 = arith.truncf %177 : vector<16x64xf32> to vector<16x64xbf16>
    %c0_57 = arith.constant 0 : index
    %c0_58 = arith.constant 0 : index
    %179 = vector.load %arg10[%c0_57, %c0_58] : memref<64x32xbf16, #tpu.memory_space<vmem>>, vector<64x32xbf16>
    %cst_59 = arith.constant dense<0.000000e+00> : vector<16x32xf32>
    %180 = tpu.matmul %178, %179, %cst_59 {dimension_numbers = #tpu.dot_dimension_numbers<[1], [0], [0], [1], [0, 0, 1, 1], [], []>} : vector<16x64xbf16>, vector<64x32xbf16>, vector<16x32xf32> -> vector<16x32xf32>
    %c0_60 = arith.constant 0 : index
    %c0_61 = arith.constant 0 : index
    %181 = vector.load %arg11[%c0_60, %c0_61] : memref<1x32xf32, #tpu.memory_space<vmem>>, vector<1x32xf32>
    %182 = vector.broadcast %181 : vector<1x32xf32> to vector<16x32xf32>
    %183 = arith.addf %180, %182 : vector<16x32xf32>
    %184 = arith.addf %169, %183 : vector<16x32xf32>
    %cst_62 = arith.constant dense<0.000000e+00> : vector<16xf32>
    %185 = vector.multi_reduction <add>, %184, %cst_62 [1] : vector<16x32xf32> to vector<16xf32>
    %186 = vector.shape_cast %185 : vector<16xf32> to vector<16x1xf32>
    %cst_63 = arith.constant 3.200000e+01 : f32
    %187 = vector.broadcast %cst_63 : f32 to vector<16x1xf32>
    %188 = arith.divf %186, %187 : vector<16x1xf32>
    %189 = vector.broadcast %188 : vector<16x1xf32> to vector<16x32xf32>
    %190 = arith.subf %184, %189 : vector<16x32xf32>
    %191 = arith.mulf %190, %190 : vector<16x32xf32>
    %cst_64 = arith.constant dense<0.000000e+00> : vector<16xf32>
    %192 = vector.multi_reduction <add>, %191, %cst_64 [1] : vector<16x32xf32> to vector<16xf32>
    %193 = vector.shape_cast %192 : vector<16xf32> to vector<16x1xf32>
    %cst_65 = arith.constant 3.200000e+01 : f32
    %194 = vector.broadcast %cst_65 : f32 to vector<16x1xf32>
    %195 = arith.divf %193, %194 : vector<16x1xf32>
    %cst_66 = arith.constant 9.99999974E-6 : f32
    %196 = vector.broadcast %cst_66 : f32 to vector<16x1xf32>
    %197 = arith.addf %195, %196 : vector<16x1xf32>
    %198 = math.rsqrt %197 : vector<16x1xf32>
    %199 = vector.broadcast %188 : vector<16x1xf32> to vector<16x32xf32>
    %200 = arith.subf %184, %199 : vector<16x32xf32>
    %201 = vector.broadcast %198 : vector<16x1xf32> to vector<16x32xf32>
    %202 = arith.mulf %200, %201 : vector<16x32xf32>
    %c0_67 = arith.constant 0 : index
    %c0_68 = arith.constant 0 : index
    %203 = vector.load %arg12[%c0_67, %c0_68] : memref<1x32xf32, #tpu.memory_space<vmem>>, vector<1x32xf32>
    %204 = vector.broadcast %203 : vector<1x32xf32> to vector<16x32xf32>
    %205 = arith.mulf %202, %204 : vector<16x32xf32>
    %c0_69 = arith.constant 0 : index
    %c0_70 = arith.constant 0 : index
    %206 = vector.load %arg13[%c0_69, %c0_70] : memref<1x32xf32, #tpu.memory_space<vmem>>, vector<1x32xf32>
    %207 = vector.broadcast %206 : vector<1x32xf32> to vector<16x32xf32>
    %208 = arith.addf %205, %207 : vector<16x32xf32>
    %c0_71 = arith.constant 0 : index
    %c0_72 = arith.constant 0 : index
    %209 = vector.load %arg14[%c0_71, %c0_72] : memref<16x32xf32, #tpu.memory_space<vmem>>, vector<16x32xf32>
    tpu.vector_store %arg14[%c0_71, %c0_72], %208 {strides = array<i32>} : memref<16x32xf32, #tpu.memory_space<vmem>>, vector<16x32xf32>,
    return
  }
  func.func @transform_0(%arg0: i32) -> (i32, i32) {
    %c0_i32 = arith.constant 0 : i32
    %c0_i32_0 = arith.constant 0 : i32
    return %arg0, %c0_i32 : i32, i32
  }
  func.func @transform_1(%arg0: i32) -> (i32, i32) {
    %c0_i32 = arith.constant 0 : i32
    %c0_i32_0 = arith.constant 0 : i32
    %c0_i32_1 = arith.constant 0 : i32
    return %c0_i32, %c0_i32_0 : i32, i32
  }
  func.func @transform_2(%arg0: i32) -> (i32, i32) {
    %c0_i32 = arith.constant 0 : i32
    %c0_i32_0 = arith.constant 0 : i32
    %c0_i32_1 = arith.constant 0 : i32
    return %c0_i32, %c0_i32_0 : i32, i32
  }
  func.func @transform_3(%arg0: i32) -> (i32, i32) {
    %c0_i32 = arith.constant 0 : i32
    %c0_i32_0 = arith.constant 0 : i32
    %c0_i32_1 = arith.constant 0 : i32
    return %c0_i32, %c0_i32_0 : i32, i32
  }
  func.func @transform_4(%arg0: i32) -> (i32, i32) {
    %c0_i32 = arith.constant 0 : i32
    %c0_i32_0 = arith.constant 0 : i32
    %c0_i32_1 = arith.constant 0 : i32
    return %c0_i32, %c0_i32_0 : i32, i32
  }
  func.func @transform_5(%arg0: i32) -> (i32, i32) {
    %c0_i32 = arith.constant 0 : i32
    %c0_i32_0 = arith.constant 0 : i32
    %c0_i32_1 = arith.constant 0 : i32
    return %c0_i32, %c0_i32_0 : i32, i32
  }
  func.func @transform_6(%arg0: i32) -> (i32, i32) {
    %c0_i32 = arith.constant 0 : i32
    %c0_i32_0 = arith.constant 0 : i32
    %c0_i32_1 = arith.constant 0 : i32
    return %c0_i32, %c0_i32_0 : i32, i32
  }
  func.func @transform_7(%arg0: i32) -> (i32, i32) {
    %c0_i32 = arith.constant 0 : i32
    %c0_i32_0 = arith.constant 0 : i32
    %c0_i32_1 = arith.constant 0 : i32
    return %c0_i32, %c0_i32_0 : i32, i32
  }
  func.func @transform_8(%arg0: i32) -> (i32, i32) {
    %c0_i32 = arith.constant 0 : i32
    %c0_i32_0 = arith.constant 0 : i32
    %c0_i32_1 = arith.constant 0 : i32
    return %c0_i32, %c0_i32_0 : i32, i32
  }
  func.func @transform_9(%arg0: i32) -> (i32, i32) {
    %c0_i32 = arith.constant 0 : i32
    %c0_i32_0 = arith.constant 0 : i32
    %c0_i32_1 = arith.constant 0 : i32
    return %c0_i32, %c0_i32_0 : i32, i32
  }
  func.func @transform_10(%arg0: i32) -> (i32, i32) {
    %c0_i32 = arith.constant 0 : i32
    %c0_i32_0 = arith.constant 0 : i32
    %c0_i32_1 = arith.constant 0 : i32
    return %c0_i32, %c0_i32_0 : i32, i32
  }
  func.func @transform_11(%arg0: i32) -> (i32, i32) {
    %c0_i32 = arith.constant 0 : i32
    %c0_i32_0 = arith.constant 0 : i32
    %c0_i32_1 = arith.constant 0 : i32
    return %c0_i32, %c0_i32_0 : i32, i32
  }
  func.func @transform_12(%arg0: i32) -> (i32, i32) {
    %c0_i32 = arith.constant 0 : i32
    %c0_i32_0 = arith.constant 0 : i32
    %c0_i32_1 = arith.constant 0 : i32
    return %c0_i32, %c0_i32_0 : i32, i32
  }
  func.func @transform_13(%arg0: i32) -> (i32, i32) {
    %c0_i32 = arith.constant 0 : i32
    %c0_i32_0 = arith.constant 0 : i32
    return %arg0, %c0_i32 : i32, i32
  }
}

</mosaic_0001>

<llo_original>
// kernel: tpu_custom_call.1
$region0: #{tpu_custom_call.1}
  #allocation0 [shape = 'u32[]', space=smem, size = 0x4, offset = 0x4, fixed_abs, tag = 'smem constant byte address 0x4 - core index']
  #allocation1 [shape = 'u32[144,128]{1,0:T(1,128)}', space=vmem, size = 0x12000, scoped, tag = 'internal scratch']
  %s0 = inlined_call_operand.vmem [shape: f32[16,32], index: 0, kind: input, shape index: {}]
  %s1 = inlined_call_operand.vmem [shape: bf16[32,96], index: 1, kind: input, shape index: {}]
  %s2 = inlined_call_operand.vmem [shape: f32[1,96], index: 2, kind: input, shape index: {}]
  %s3 = inlined_call_operand.vmem [shape: bf16[32,32], index: 3, kind: input, shape index: {}]
  %s4 = inlined_call_operand.vmem [shape: f32[1,32], index: 4, kind: input, shape index: {}]
  %s5 = inlined_call_operand.vmem [shape: f32[1,32], index: 5, kind: input, shape index: {}]
  %s6 = inlined_call_operand.vmem [shape: f32[1,32], index: 6, kind: input, shape index: {}]
  %s7 = inlined_call_operand.hbm [shape: bf16[32,64], index: 7, kind: input, shape index: {}]
  %s8 = inlined_call_operand.vmem [shape: f32[1,64], index: 8, kind: input, shape index: {}]
  %s9 = inlined_call_operand.vmem [shape: bf16[64,32], index: 9, kind: input, shape index: {}]
  %s10 = inlined_call_operand.vmem [shape: f32[1,32], index: 10, kind: input, shape index: {}]
  %s11 = inlined_call_operand.vmem [shape: f32[1,32], index: 11, kind: input, shape index: {}]
  %s12 = inlined_call_operand.vmem [shape: f32[1,32], index: 12, kind: input, shape index: {}]
  %s13 = inlined_call_operand.hbm [shape: f32[16,32], index: 13, kind: output, shape index: {}]
  %s14 = sld [smem:[#allocation0]]
  $region66: #{tpu_custom_call.1} parent=0
    _
  %s16 = ssub.s32 1, %s14
  %s17 = scalar_select 0, %s16, %s14
  $region1: #{tpu_custom_call.1} parent=0
    #allocation2 [shape = 'u8[8192]{0}', space=vmem, size = 0x2000, scoped, tag = 'input window, operand 7, single buffered']
    #allocation3 [shape = 's32[1]{0}', space=sflag, size = 0x4, scoped, tag = 'scoped memory for tpu_custom_call.1']
    #allocation4 [shape = 's32[1]{0}', space=sflag, size = 0x4, scoped, tag = 'scoped memory for tpu_custom_call.1']
    #allocation5 [shape = 'u8[8192]{0}', space=vmem, size = 0x2000, scoped, tag = 'output window, operand 0, single buffered']
    %18 = vsyncpa [#allocation3], 0
    %19 = vsyncpa [#allocation4], 0
    // Predicated region
    $region2: #{tpu_custom_call.1} parent=1 // pred_check
      _
    $region3: #{tpu_custom_call.1} parent=1 // pred_check_branch
      %21 = sbr.rel (0) target = $region5
    $region4: #{tpu_custom_call.1} parent=1 // pred_region
      _
    $region5: #{tpu_custom_call.1} parent=1 // pred_fallthru
      _
    // Predicated region
    $region6: #{tpu_custom_call.1} parent=1 // pred_check
      _
    $region7: #{tpu_custom_call.1} parent=1 // pred_check_branch
      %23 = sbr.rel (0) target = $region9
    $region8: #{tpu_custom_call.1} parent=1 // pred_region
      _
    $region9: #{tpu_custom_call.1} parent=1 // pred_fallthru
      _
    // Predicated region
    $region10: #{tpu_custom_call.1} parent=1 // pred_check
      _
    $region11: #{tpu_custom_call.1} parent=1 // pred_check_branch
      %25 = sbr.rel (0) target = $region13
    $region12: #{tpu_custom_call.1} parent=1 // pred_region
      _
    $region13: #{tpu_custom_call.1} parent=1 // pred_fallthru
      _
    // Predicated region
    $region14: #{tpu_custom_call.1} parent=1 // pred_check
      _
    $region15: #{tpu_custom_call.1} parent=1 // pred_check_branch
      %27 = sbr.rel (0) target = $region17
    $region16: #{tpu_custom_call.1} parent=1 // pred_region
      _
    $region17: #{tpu_custom_call.1} parent=1 // pred_fallthru
      _
    // Predicated region
    $region18: #{tpu_custom_call.1} parent=1 // pred_check
      _
    $region19: #{tpu_custom_call.1} parent=1 // pred_check_branch
      %29 = sbr.rel (0) target = $region21
    $region20: #{tpu_custom_call.1} parent=1 // pred_region
      _
    $region21: #{tpu_custom_call.1} parent=1 // pred_fallthru
      _
    // Predicated region
    $region22: #{tpu_custom_call.1} parent=1 // pred_check
      _
    $region23: #{tpu_custom_call.1} parent=1 // pred_check_branch
      %31 = sbr.rel (0) target = $region25
    $region24: #{tpu_custom_call.1} parent=1 // pred_region
      _
    $region25: #{tpu_custom_call.1} parent=1 // pred_fallthru
      _
    // Predicated region
    $region26: #{tpu_custom_call.1} parent=1 // pred_check
      _
    $region27: #{tpu_custom_call.1} parent=1 // pred_check_branch
      %33 = sbr.rel (0) target = $region29
    $region28: #{tpu_custom_call.1} parent=1 // pred_region
      _
    $region29: #{tpu_custom_call.1} parent=1 // pred_fallthru
      _
    // Predicated region
    $region30: #{tpu_custom_call.1} parent=1 // pred_check
      _
    $region31: #{tpu_custom_call.1} parent=1 // pred_check_branch
      %35 = sbr.rel (0) target = $region33
    $region32: #{tpu_custom_call.1} parent=1 // pred_region
      %s37 = ssub.s32 256, 256
      %38 = vsyncadd [#allocation3], %s37
      %s39 = sshll.u32 [#allocation2], 4
      %s40 = int_to_ptr.vmem [resolvable:$true] %s39
      %45 = dma.hbm_to_vmem [thread:$0]  %s7, 256, %s40, [#allocation3], 64, 64, 4
    $region33: #{tpu_custom_call.1} parent=1 // pred_fallthru
      _
    // Predicated region
    $region34: #{tpu_custom_call.1} parent=1 // pred_check
      _
    $region35: #{tpu_custom_call.1} parent=1 // pred_check_branch
      %47 = sbr.rel (0) target = $region37
    $region36: #{tpu_custom_call.1} parent=1 // pred_region
      _
    $region37: #{tpu_custom_call.1} parent=1 // pred_fallthru
      _
    // Predicated region
    $region38: #{tpu_custom_call.1} parent=1 // pred_check
      _
    $region39: #{tpu_custom_call.1} parent=1 // pred_check_branch
      %49 = sbr.rel (0) target = $region41
    $region40: #{tpu_custom_call.1} parent=1 // pred_region
      _
    $region41: #{tpu_custom_call.1} parent=1 // pred_fallthru
      _
    // Predicated region
    $region42: #{tpu_custom_call.1} parent=1 // pred_check
      _
    $region43: #{tpu_custom_call.1} parent=1 // pred_check_branch
      %51 = sbr.rel (0) target = $region45
    $region44: #{tpu_custom_call.1} parent=1 // pred_region
      _
    $region45: #{tpu_custom_call.1} parent=1 // pred_fallthru
      _
    // Predicated region
    $region46: #{tpu_custom_call.1} parent=1 // pred_check
      _
    $region47: #{tpu_custom_call.1} parent=1 // pred_check_branch
      %53 = sbr.rel (0) target = $region49
    $region48: #{tpu_custom_call.1} parent=1 // pred_region
      _
    $region49: #{tpu_custom_call.1} parent=1 // pred_fallthru
      _
    // Predicated region
    $region50: #{tpu_custom_call.1} parent=1 // pred_check
      _
    $region51: #{tpu_custom_call.1} parent=1 // pred_check_branch
      %55 = sbr.rel (0) target = $region53
    $region52: #{tpu_custom_call.1} parent=1 // pred_region
      _
    $region53: #{tpu_custom_call.1} parent=1 // pred_fallthru
      _
    // Predicated region
    $region54: #{tpu_custom_call.1} parent=1 // pred_check
      _
    $region55: #{tpu_custom_call.1} parent=1 // pred_check_branch
      %57 = sbr.rel (0) target = $region57
    $region56: #{tpu_custom_call.1} parent=1 // pred_region
      %58 = dma.done [#allocation3], 256
    $region57: #{tpu_custom_call.1} parent=1 // pred_fallthru
      _
    %v60 = vld [vmem:[%s0] sm:$0xff]
    %v61 = vld [vmem:[%s0 + $0x8] sm:$0xff]
    %v62 = vpack.c.bf16 %v61, %v60
    %v63 = vld [vmem:[%s1] sm:$0xf]
    %v64 = vld [vmem:[%s1 + $0x4] sm:$0xf]
    %v65 = vld [vmem:[%s1 + $0x8] sm:$0xf]
    %v66 = vld [vmem:[%s1 + $0xc] sm:$0xf]
    %v67 = vld [vmem:[%s2] sm:$0x1]
    %v69 = vlaneseq
    %v70 = vshrl.u32 %v69, 7
    %v71 = vsub.s32 0, %v70
    %v72 = vrot.slane %v67, %v71
    %v78 = vunpack.c.l.b16 %v63
    %v79 = vunpack.c.l.b16 %v64
    %v80 = vunpack.c.l.b16 %v65
    %v81 = vunpack.c.l.b16 %v66
    %v82 = vpack.c.b16 %v79, %v78
    %v83 = vpack.c.b16 %v81, %v80
    %vm86 = vcmask 261120
    %v88 = vsel %vm86, %v62, 0
    %90 = vmatprep.subr.bf16.mxu0 0
    %91 = vmatpush1.bf16.msra.mxu0 %v82
    %92 = vmatprep.subr.bf16.mxu0 0
    %93 = vmatpush1.bf16.msra.mxu0 %v83
    %94 = vmatprep.subr.bf16.mxu0 0
    %95 = vmatpush1.bf16.msra.mxu0 0
    %96 = vmatprep.subr.bf16.mxu0 0
    %97 = vmatpush1.bf16.msra.mxu0 0
    %98 = vmatprep.subr.bf16.mxu0 0
    %99 = vmatpush1.bf16.msra.mxu0 0
    %100 = vmatprep.subr.bf16.mxu0 0
    %101 = vmatpush1.bf16.msra.mxu0 0
    %102 = vmatprep.subr.bf16.mxu0 0
    %103 = vmatpush1.bf16.msra.mxu0 0
    %104 = vmatprep.subr.bf16.mxu0 0
    %105 = vmatpush1.bf16.msra.mxu0 0
    %106 = vmatprep.subr.bf16.mxu0 0
    %107 = vmatpush1.bf16.msra.mxu0 0
    %108 = vmatprep.subr.bf16.mxu0 0
    %109 = vmatpush1.bf16.msra.mxu0 0
    %110 = vmatprep.subr.bf16.mxu0 0
    %111 = vmatpush1.bf16.msra.mxu0 0
    %112 = vmatprep.subr.bf16.mxu0 0
    %113 = vmatpush1.bf16.msra.mxu0 0
    %114 = vmatprep.subr.bf16.mxu0 0
    %115 = vmatpush1.bf16.msra.mxu0 0
    %116 = vmatprep.subr.bf16.mxu0 0
    %117 = vmatpush1.bf16.msra.mxu0 0
    %118 = vmatprep.subr.bf16.mxu0 0
    %119 = vmatpush1.bf16.msra.mxu0 0
    %120 = vmatprep.subr.bf16.mxu0 0
    %121 = vmatpush1.bf16.msra.mxu0 0
    %122 = vmatprep.mubr.bf16.mxu0 0
    %123 = vmatmul.mubr.bf16.gmra.mrb[0].mxu0 %v88
    %v124 = vpop.f32.mrb[0].mxu0
    %v125 = vadd.f32 %v72, %v124
    %v126 = vpop.f32.mrb[0].mxu0
    %v127 = vpop.f32.mrb[0].mxu0
    %v128 = vadd.f32 %v72, %v127
    %v129 = vpop.f32.mrb[0].mxu0
    %130 = vdwg.mxu0
    %v131 = vpack.c.bf16 %v128, %v125
    %133 = vrot.lane.b32.xlu0 %v131, 96
    %v134 = vpop.permute.xlu0 %133
    %vm135 = vcmask 64512
    %v137 = vsel %vm135, %v131, 0
    %v140 = vsel %vm135, %v134, 0
    %142 = vmatprep.subr.bf16.mxu0 0
    %143 = vmatpush1.bf16.xpose.msra.mxu0 %v140
    %144 = vmatprep.subr.bf16.mxu0 0
    %145 = vmatpush1.bf16.xpose.msra.mxu0 0
    %146 = vmatprep.subr.bf16.mxu0 0
    %147 = vmatpush1.bf16.xpose.msra.mxu0 0
    %148 = vmatprep.subr.bf16.mxu0 0
    %149 = vmatpush1.bf16.xpose.msra.mxu0 0
    %150 = vmatprep.subr.bf16.mxu0 0
    %151 = vmatpush1.bf16.xpose.msra.mxu0 0
    %152 = vmatprep.subr.bf16.mxu0 0
    %153 = vmatpush1.bf16.xpose.msra.mxu0 0
    %154 = vmatprep.subr.bf16.mxu0 0
    %155 = vmatpush1.bf16.xpose.msra.mxu0 0
    %156 = vmatprep.subr.bf16.mxu0 0
    %157 = vmatpush1.bf16.xpose.msra.mxu0 0
    %158 = vmatprep.subr.bf16.mxu0 0
    %159 = vmatpush1.bf16.xpose.msra.mxu0 0
    %160 = vmatprep.subr.bf16.mxu0 0
    %161 = vmatpush1.bf16.xpose.msra.mxu0 0
    %162 = vmatprep.subr.bf16.mxu0 0
    %163 = vmatpush1.bf16.xpose.msra.mxu0 0
    %164 = vmatprep.subr.bf16.mxu0 0
    %165 = vmatpush1.bf16.xpose.msra.mxu0 0
    %166 = vmatprep.subr.bf16.mxu0 0
    %167 = vmatpush1.bf16.xpose.msra.mxu0 0
    %168 = vmatprep.subr.bf16.mxu0 0
    %169 = vmatpush1.bf16.xpose.msra.mxu0 0
    %170 = vmatprep.subr.bf16.mxu0 0
    %171 = vmatpush1.bf16.xpose.msra.mxu0 0
    %172 = vmatprep.subr.bf16.mxu0 0
    %173 = vmatpush1.bf16.xpose.msra.mxu0 0
    %174 = vmatprep.mubr.bf16.mxu0 0
    %175 = vmatmul.mubr.bf16.gmra.mrb[0].mxu0 %v137
    %v176 = vpop.f32.mrb[0].mxu0
    %v177 = vadd.f32 0.0, %v176
    %v178 = vpop.f32.mrb[0].mxu0
    %v179 = vpop.f32.mrb[0].mxu0
    %v180 = vpop.f32.mrb[0].mxu0
    %181 = vdwg.mxu0
    %v182 = vsel %vm135, %v177, -inf
    %183 = vmax.xlane.f32.xlu0 %v182
    %v184 = vpop.xlane.xlu0 %183
    %v185 = vsub.f32 %v177, %v184
    %v186 = vmul.f32 %v185, 1.442695
    %v187 = vpow.pop %v186
    %v188 = vsel %vm135, %v187, 0.0
    %189 = vadd.xlane.f32.xlu0 %v188
    %v190 = vpop.xlane.xlu0 %189
    %v191 = vrcp.pop %v190
    %v192 = vmul.f32 %v187, %v191
    %v193 = vpack.c.bf16 %v192, %v192
    %194 = vrot.lane.b32.xlu0 %v131, 64
    %v195 = vpop.permute.xlu0 %194
    %v197 = vsel %vm135, %v193, 0
    %vm199 = vcmask 1043456
    %v201 = vsel %vm199, %v195, 0
    %203 = vmatprep.subr.bf16.mxu0 0
    %204 = vmatpush1.bf16.msra.mxu0 %v201
    %205 = vmatprep.subr.bf16.mxu0 0
    %206 = vmatpush1.bf16.msra.mxu0 0
    %207 = vmatprep.subr.bf16.mxu0 0
    %208 = vmatpush1.bf16.msra.mxu0 0
    %209 = vmatprep.subr.bf16.mxu0 0
    %210 = vmatpush1.bf16.msra.mxu0 0
    %211 = vmatprep.subr.bf16.mxu0 0
    %212 = vmatpush1.bf16.msra.mxu0 0
    %213 = vmatprep.subr.bf16.mxu0 0
    %214 = vmatpush1.bf16.msra.mxu0 0
    %215 = vmatprep.subr.bf16.mxu0 0
    %216 = vmatpush1.bf16.msra.mxu0 0
    %217 = vmatprep.subr.bf16.mxu0 0
    %218 = vmatpush1.bf16.msra.mxu0 0
    %219 = vmatprep.subr.bf16.mxu0 0
    %220 = vmatpush1.bf16.msra.mxu0 0
    %221 = vmatprep.subr.bf16.mxu0 0
    %222 = vmatpush1.bf16.msra.mxu0 0
    %223 = vmatprep.subr.bf16.mxu0 0
    %224 = vmatpush1.bf16.msra.mxu0 0
    %225 = vmatprep.subr.bf16.mxu0 0
    %226 = vmatpush1.bf16.msra.mxu0 0
    %227 = vmatprep.subr.bf16.mxu0 0
    %228 = vmatpush1.bf16.msra.mxu0 0
    %229 = vmatprep.subr.bf16.mxu0 0
    %230 = vmatpush1.bf16.msra.mxu0 0
    %231 = vmatprep.subr.bf16.mxu0 0
    %232 = vmatpush1.bf16.msra.mxu0 0
    %233 = vmatprep.subr.bf16.mxu0 0
    %234 = vmatpush1.bf16.msra.mxu0 0
    %235 = vmatprep.mubr.bf16.mxu0 0
    %236 = vmatmul.mubr.bf16.gmra.mrb[0].mxu0 %v197
    %v237 = vpop.f32.mrb[0].mxu0
    %v238 = vadd.f32 0.0, %v237
    %v239 = vpop.f32.mrb[0].mxu0
    %v240 = vpop.f32.mrb[0].mxu0
    %v241 = vpop.f32.mrb[0].mxu0
    %242 = vdwg.mxu0
    %243 = vrot.lane.b32.xlu0 %v131, 120
    %v244 = vpop.permute.xlu0 %243
    %245 = vrot.lane.b32.xlu0 %v131, 88
    %v246 = vpop.permute.xlu0 %245
    %v248 = vsel %vm135, %v244, 0
    %v251 = vsel %vm135, %v246, 0
    %253 = vmatprep.subr.bf16.mxu0 0
    %254 = vmatpush1.bf16.xpose.msra.mxu0 %v251
    %255 = vmatprep.subr.bf16.mxu0 0
    %256 = vmatpush1.bf16.xpose.msra.mxu0 0
    %257 = vmatprep.subr.bf16.mxu0 0
    %258 = vmatpush1.bf16.xpose.msra.mxu0 0
    %259 = vmatprep.subr.bf16.mxu0 0
    %260 = vmatpush1.bf16.xpose.msra.mxu0 0
    %261 = vmatprep.subr.bf16.mxu0 0
    %262 = vmatpush1.bf16.xpose.msra.mxu0 0
    %263 = vmatprep.subr.bf16.mxu0 0
    %264 = vmatpush1.bf16.xpose.msra.mxu0 0
    %265 = vmatprep.subr.bf16.mxu0 0
    %266 = vmatpush1.bf16.xpose.msra.mxu0 0
    %267 = vmatprep.subr.bf16.mxu0 0
    %268 = vmatpush1.bf16.xpose.msra.mxu0 0
    %269 = vmatprep.subr.bf16.mxu0 0
    %270 = vmatpush1.bf16.xpose.msra.mxu0 0
    %271 = vmatprep.subr.bf16.mxu0 0
    %272 = vmatpush1.bf16.xpose.msra.mxu0 0
    %273 = vmatprep.subr.bf16.mxu0 0
    %274 = vmatpush1.bf16.xpose.msra.mxu0 0
    %275 = vmatprep.subr.bf16.mxu0 0
    %276 = vmatpush1.bf16.xpose.msra.mxu0 0
    %277 = vmatprep.subr.bf16.mxu0 0
    %278 = vmatpush1.bf16.xpose.msra.mxu0 0
    %279 = vmatprep.subr.bf16.mxu0 0
    %280 = vmatpush1.bf16.xpose.msra.mxu0 0
    %281 = vmatprep.subr.bf16.mxu0 0
    %282 = vmatpush1.bf16.xpose.msra.mxu0 0
    %283 = vmatprep.subr.bf16.mxu0 0
    %284 = vmatpush1.bf16.xpose.msra.mxu0 0
    %285 = vmatprep.mubr.bf16.mxu0 0
    %286 = vmatmul.mubr.bf16.gmra.mrb[0].mxu0 %v248
    %v287 = vpop.f32.mrb[0].mxu0
    %v288 = vadd.f32 0.0, %v287
    %v289 = vpop.f32.mrb[0].mxu0
    %v290 = vpop.f32.mrb[0].mxu0
    %v291 = vpop.f32.mrb[0].mxu0
    %292 = vdwg.mxu0
    %v293 = vsel %vm135, %v288, -inf
    %294 = vmax.xlane.f32.xlu0 %v293
    %v295 = vpop.xlane.xlu0 %294
    %v296 = vsub.f32 %v288, %v295
    %v297 = vmul.f32 %v296, 1.442695
    %v298 = vpow.pop %v297
    %v299 = vsel %vm135, %v298, 0.0
    %300 = vadd.xlane.f32.xlu0 %v299
    %v301 = vpop.xlane.xlu0 %300
    %v302 = vrcp.pop %v301
    %v303 = vmul.f32 %v298, %v302
    %v304 = vpack.c.bf16 %v303, %v303
    %305 = vrot.lane.b32.xlu0 %v131, 56
    %v306 = vpop.permute.xlu0 %305
    %v308 = vsel %vm135, %v304, 0
    %v311 = vsel %vm199, %v306, 0
    %313 = vmatprep.subr.bf16.mxu0 0
    %314 = vmatpush1.bf16.msra.mxu0 %v311
    %315 = vmatprep.subr.bf16.mxu0 0
    %316 = vmatpush1.bf16.msra.mxu0 0
    %317 = vmatprep.subr.bf16.mxu0 0
    %318 = vmatpush1.bf16.msra.mxu0 0
    %319 = vmatprep.subr.bf16.mxu0 0
    %320 = vmatpush1.bf16.msra.mxu0 0
    %321 = vmatprep.subr.bf16.mxu0 0
    %322 = vmatpush1.bf16.msra.mxu0 0
    %323 = vmatprep.subr.bf16.mxu0 0
    %324 = vmatpush1.bf16.msra.mxu0 0
    %325 = vmatprep.subr.bf16.mxu0 0
    %326 = vmatpush1.bf16.msra.mxu0 0
    %327 = vmatprep.subr.bf16.mxu0 0
    %328 = vmatpush1.bf16.msra.mxu0 0
    %329 = vmatprep.subr.bf16.mxu0 0
    %330 = vmatpush1.bf16.msra.mxu0 0
    %331 = vmatprep.subr.bf16.mxu0 0
    %332 = vmatpush1.bf16.msra.mxu0 0
    %333 = vmatprep.subr.bf16.mxu0 0
    %334 = vmatpush1.bf16.msra.mxu0 0
    %335 = vmatprep.subr.bf16.mxu0 0
    %336 = vmatpush1.bf16.msra.mxu0 0
    %337 = vmatprep.subr.bf16.mxu0 0
    %338 = vmatpush1.bf16.msra.mxu0 0
    %339 = vmatprep.subr.bf16.mxu0 0
    %340 = vmatpush1.bf16.msra.mxu0 0
    %341 = vmatprep.subr.bf16.mxu0 0
    %342 = vmatpush1.bf16.msra.mxu0 0
    %343 = vmatprep.subr.bf16.mxu0 0
    %344 = vmatpush1.bf16.msra.mxu0 0
    %345 = vmatprep.mubr.bf16.mxu0 0
    %346 = vmatmul.mubr.bf16.gmra.mrb[0].mxu0 %v308
    %v347 = vpop.f32.mrb[0].mxu0
    %v348 = vadd.f32 0.0, %v347
    %v349 = vpop.f32.mrb[0].mxu0
    %v350 = vpop.f32.mrb[0].mxu0
    %v351 = vpop.f32.mrb[0].mxu0
    %352 = vdwg.mxu0
    %353 = vrot.lane.b32.xlu0 %v131, 112
    %v354 = vpop.permute.xlu0 %353
    %355 = vrot.lane.b32.xlu0 %v131, 80
    %v356 = vpop.permute.xlu0 %355
    %v358 = vsel %vm135, %v354, 0
    %v361 = vsel %vm135, %v356, 0
    %363 = vmatprep.subr.bf16.mxu0 0
    %364 = vmatpush1.bf16.xpose.msra.mxu0 %v361
    %365 = vmatprep.subr.bf16.mxu0 0
    %366 = vmatpush1.bf16.xpose.msra.mxu0 0
    %367 = vmatprep.subr.bf16.mxu0 0
    %368 = vmatpush1.bf16.xpose.msra.mxu0 0
    %369 = vmatprep.subr.bf16.mxu0 0
    %370 = vmatpush1.bf16.xpose.msra.mxu0 0
    %371 = vmatprep.subr.bf16.mxu0 0
    %372 = vmatpush1.bf16.xpose.msra.mxu0 0
    %373 = vmatprep.subr.bf16.mxu0 0
    %374 = vmatpush1.bf16.xpose.msra.mxu0 0
    %375 = vmatprep.subr.bf16.mxu0 0
    %376 = vmatpush1.bf16.xpose.msra.mxu0 0
    %377 = vmatprep.subr.bf16.mxu0 0
    %378 = vmatpush1.bf16.xpose.msra.mxu0 0
    %379 = vmatprep.subr.bf16.mxu0 0
    %380 = vmatpush1.bf16.xpose.msra.mxu0 0
    %381 = vmatprep.subr.bf16.mxu0 0
    %382 = vmatpush1.bf16.xpose.msra.mxu0 0
    %383 = vmatprep.subr.bf16.mxu0 0
    %384 = vmatpush1.bf16.xpose.msra.mxu0 0
    %385 = vmatprep.subr.bf16.mxu0 0
    %386 = vmatpush1.bf16.xpose.msra.mxu0 0
    %387 = vmatprep.subr.bf16.mxu0 0
    %388 = vmatpush1.bf16.xpose.msra.mxu0 0
    %389 = vmatprep.subr.bf16.mxu0 0
    %390 = vmatpush1.bf16.xpose.msra.mxu0 0
    %391 = vmatprep.subr.bf16.mxu0 0
    %392 = vmatpush1.bf16.xpose.msra.mxu0 0
    %393 = vmatprep.subr.bf16.mxu0 0
    %394 = vmatpush1.bf16.xpose.msra.mxu0 0
    %395 = vmatprep.mubr.bf16.mxu0 0
    %396 = vmatmul.mubr.bf16.gmra.mrb[0].mxu0 %v358
    %v397 = vpop.f32.mrb[0].mxu0
    %v398 = vadd.f32 0.0, %v397
    %v399 = vpop.f32.mrb[0].mxu0
    %v400 = vpop.f32.mrb[0].mxu0
    %v401 = vpop.f32.mrb[0].mxu0
    %402 = vdwg.mxu0
    %v403 = vsel %vm135, %v398, -inf
    %404 = vmax.xlane.f32.xlu0 %v403
    %v405 = vpop.xlane.xlu0 %404
    %v406 = vsub.f32 %v398, %v405
    %v407 = vmul.f32 %v406, 1.442695
    %v408 = vpow.pop %v407
    %v409 = vsel %vm135, %v408, 0.0
    %410 = vadd.xlane.f32.xlu0 %v409
    %v411 = vpop.xlane.xlu0 %410
    %v412 = vrcp.pop %v411
    %v413 = vmul.f32 %v408, %v412
    %v414 = vpack.c.bf16 %v413, %v413
    %415 = vrot.lane.b32.xlu0 %v131, 48
    %v416 = vpop.permute.xlu0 %415
    %v418 = vsel %vm135, %v414, 0
    %v421 = vsel %vm199, %v416, 0
    %423 = vmatprep.subr.bf16.mxu0 0
    %424 = vmatpush1.bf16.msra.mxu0 %v421
    %425 = vmatprep.subr.bf16.mxu0 0
    %426 = vmatpush1.bf16.msra.mxu0 0
    %427 = vmatprep.subr.bf16.mxu0 0
    %428 = vmatpush1.bf16.msra.mxu0 0
    %429 = vmatprep.subr.bf16.mxu0 0
    %430 = vmatpush1.bf16.msra.mxu0 0
    %431 = vmatprep.subr.bf16.mxu0 0
    %432 = vmatpush1.bf16.msra.mxu0 0
    %433 = vmatprep.subr.bf16.mxu0 0
    %434 = vmatpush1.bf16.msra.mxu0 0
    %435 = vmatprep.subr.bf16.mxu0 0
    %436 = vmatpush1.bf16.msra.mxu0 0
    %437 = vmatprep.subr.bf16.mxu0 0
    %438 = vmatpush1.bf16.msra.mxu0 0
    %439 = vmatprep.subr.bf16.mxu0 0
    %440 = vmatpush1.bf16.msra.mxu0 0
    %441 = vmatprep.subr.bf16.mxu0 0
    %442 = vmatpush1.bf16.msra.mxu0 0
    %443 = vmatprep.subr.bf16.mxu0 0
    %444 = vmatpush1.bf16.msra.mxu0 0
    %445 = vmatprep.subr.bf16.mxu0 0
    %446 = vmatpush1.bf16.msra.mxu0 0
    %447 = vmatprep.subr.bf16.mxu0 0
    %448 = vmatpush1.bf16.msra.mxu0 0
    %449 = vmatprep.subr.bf16.mxu0 0
    %450 = vmatpush1.bf16.msra.mxu0 0
    %451 = vmatprep.subr.bf16.mxu0 0
    %452 = vmatpush1.bf16.msra.mxu0 0
    %453 = vmatprep.subr.bf16.mxu0 0
    %454 = vmatpush1.bf16.msra.mxu0 0
    %455 = vmatprep.mubr.bf16.mxu0 0
    %456 = vmatmul.mubr.bf16.gmra.mrb[0].mxu0 %v418
    %v457 = vpop.f32.mrb[0].mxu0
    %v458 = vadd.f32 0.0, %v457
    %v459 = vpop.f32.mrb[0].mxu0
    %v460 = vpop.f32.mrb[0].mxu0
    %v461 = vpop.f32.mrb[0].mxu0
    %462 = vdwg.mxu0
    %463 = vrot.lane.b32.xlu0 %v131, 104
    %v464 = vpop.permute.xlu0 %463
    %465 = vrot.lane.b32.xlu0 %v131, 72
    %v466 = vpop.permute.xlu0 %465
    %v468 = vsel %vm135, %v464, 0
    %v471 = vsel %vm135, %v466, 0
    %473 = vmatprep.subr.bf16.mxu0 0
    %474 = vmatpush1.bf16.xpose.msra.mxu0 %v471
    %475 = vmatprep.subr.bf16.mxu0 0
    %476 = vmatpush1.bf16.xpose.msra.mxu0 0
    %477 = vmatprep.subr.bf16.mxu0 0
    %478 = vmatpush1.bf16.xpose.msra.mxu0 0
    %479 = vmatprep.subr.bf16.mxu0 0
    %480 = vmatpush1.bf16.xpose.msra.mxu0 0
    %481 = vmatprep.subr.bf16.mxu0 0
    %482 = vmatpush1.bf16.xpose.msra.mxu0 0
    %483 = vmatprep.subr.bf16.mxu0 0
    %484 = vmatpush1.bf16.xpose.msra.mxu0 0
    %485 = vmatprep.subr.bf16.mxu0 0
    %486 = vmatpush1.bf16.xpose.msra.mxu0 0
    %487 = vmatprep.subr.bf16.mxu0 0
    %488 = vmatpush1.bf16.xpose.msra.mxu0 0
    %489 = vmatprep.subr.bf16.mxu0 0
    %490 = vmatpush1.bf16.xpose.msra.mxu0 0
    %491 = vmatprep.subr.bf16.mxu0 0
    %492 = vmatpush1.bf16.xpose.msra.mxu0 0
    %493 = vmatprep.subr.bf16.mxu0 0
    %494 = vmatpush1.bf16.xpose.msra.mxu0 0
    %495 = vmatprep.subr.bf16.mxu0 0
    %496 = vmatpush1.bf16.xpose.msra.mxu0 0
    %497 = vmatprep.subr.bf16.mxu0 0
    %498 = vmatpush1.bf16.xpose.msra.mxu0 0
    %499 = vmatprep.subr.bf16.mxu0 0
    %500 = vmatpush1.bf16.xpose.msra.mxu0 0
    %501 = vmatprep.subr.bf16.mxu0 0
    %502 = vmatpush1.bf16.xpose.msra.mxu0 0
    %503 = vmatprep.subr.bf16.mxu0 0
    %504 = vmatpush1.bf16.xpose.msra.mxu0 0
    %505 = vmatprep.mubr.bf16.mxu0 0
    %506 = vmatmul.mubr.bf16.gmra.mrb[0].mxu0 %v468
    %v507 = vpop.f32.mrb[0].mxu0
    %v508 = vadd.f32 0.0, %v507
    %v509 = vpop.f32.mrb[0].mxu0
    %v510 = vpop.f32.mrb[0].mxu0
    %v511 = vpop.f32.mrb[0].mxu0
    %512 = vdwg.mxu0
    %v513 = vsel %vm135, %v508, -inf
    %514 = vmax.xlane.f32.xlu0 %v513
    %v515 = vpop.xlane.xlu0 %514
    %v516 = vsub.f32 %v508, %v515
    %v517 = vmul.f32 %v516, 1.442695
    %v518 = vpow.pop %v517
    %v519 = vsel %vm135, %v518, 0.0
    %520 = vadd.xlane.f32.xlu0 %v519
    %v521 = vpop.xlane.xlu0 %520
    %v522 = vrcp.pop %v521
    %v523 = vmul.f32 %v518, %v522
    %v524 = vpack.c.bf16 %v523, %v523
    %525 = vrot.lane.b32.xlu0 %v131, 40
    %v526 = vpop.permute.xlu0 %525
    %v528 = vsel %vm135, %v524, 0
    %v531 = vsel %vm199, %v526, 0
    %533 = vmatprep.subr.bf16.mxu0 0
    %534 = vmatpush1.bf16.msra.mxu0 %v531
    %535 = vmatprep.subr.bf16.mxu0 0
    %536 = vmatpush1.bf16.msra.mxu0 0
    %537 = vmatprep.subr.bf16.mxu0 0
    %538 = vmatpush1.bf16.msra.mxu0 0
    %539 = vmatprep.subr.bf16.mxu0 0
    %540 = vmatpush1.bf16.msra.mxu0 0
    %541 = vmatprep.subr.bf16.mxu0 0
    %542 = vmatpush1.bf16.msra.mxu0 0
    %543 = vmatprep.subr.bf16.mxu0 0
    %544 = vmatpush1.bf16.msra.mxu0 0
    %545 = vmatprep.subr.bf16.mxu0 0
    %546 = vmatpush1.bf16.msra.mxu0 0
    %547 = vmatprep.subr.bf16.mxu0 0
    %548 = vmatpush1.bf16.msra.mxu0 0
    %549 = vmatprep.subr.bf16.mxu0 0
    %550 = vmatpush1.bf16.msra.mxu0 0
    %551 = vmatprep.subr.bf16.mxu0 0
    %552 = vmatpush1.bf16.msra.mxu0 0
    %553 = vmatprep.subr.bf16.mxu0 0
    %554 = vmatpush1.bf16.msra.mxu0 0
    %555 = vmatprep.subr.bf16.mxu0 0
    %556 = vmatpush1.bf16.msra.mxu0 0
    %557 = vmatprep.subr.bf16.mxu0 0
    %558 = vmatpush1.bf16.msra.mxu0 0
    %559 = vmatprep.subr.bf16.mxu0 0
    %560 = vmatpush1.bf16.msra.mxu0 0
    %561 = vmatprep.subr.bf16.mxu0 0
    %562 = vmatpush1.bf16.msra.mxu0 0
    %563 = vmatprep.subr.bf16.mxu0 0
    %564 = vmatpush1.bf16.msra.mxu0 0
    %565 = vmatprep.mubr.bf16.mxu0 0
    %566 = vmatmul.mubr.bf16.gmra.mrb[0].mxu0 %v528
    %v567 = vpop.f32.mrb[0].mxu0
    %v568 = vadd.f32 0.0, %v567
    %v569 = vpop.f32.mrb[0].mxu0
    %v570 = vpop.f32.mrb[0].mxu0
    %v571 = vpop.f32.mrb[0].mxu0
    %572 = vdwg.mxu0
    %574 = vrot.lane.b32.xlu0 %v348, 8
    %v575 = vpop.permute.xlu0 %574
    %578 = vrot.lane.b32.xlu0 %v458, 16
    %v579 = vpop.permute.xlu0 %578
    %582 = vrot.lane.b32.xlu0 %v568, 24
    %v583 = vpop.permute.xlu0 %582
    %v585 = vsel %vm135, %v238, %v575
    %vm586 = vcmask 130048
    %v587 = vsel %vm586, %v585, %v579
    %vm588 = vcmask 195584
    %v589 = vsel %vm588, %v587, %v583
    %v590 = vrot.slane %v131, 4
    %591 = vrot.lane.b32.xlu0 %v590, 96
    %v592 = vpop.permute.xlu0 %591
    %v594 = vsel %vm135, %v590, 0
    %v597 = vsel %vm135, %v592, 0
    %599 = vmatprep.subr.bf16.mxu0 0
    %600 = vmatpush1.bf16.xpose.msra.mxu0 %v597
    %601 = vmatprep.subr.bf16.mxu0 0
    %602 = vmatpush1.bf16.xpose.msra.mxu0 0
    %603 = vmatprep.subr.bf16.mxu0 0
    %604 = vmatpush1.bf16.xpose.msra.mxu0 0
    %605 = vmatprep.subr.bf16.mxu0 0
    %606 = vmatpush1.bf16.xpose.msra.mxu0 0
    %607 = vmatprep.subr.bf16.mxu0 0
    %608 = vmatpush1.bf16.xpose.msra.mxu0 0
    %609 = vmatprep.subr.bf16.mxu0 0
    %610 = vmatpush1.bf16.xpose.msra.mxu0 0
    %611 = vmatprep.subr.bf16.mxu0 0
    %612 = vmatpush1.bf16.xpose.msra.mxu0 0
    %613 = vmatprep.subr.bf16.mxu0 0
    %614 = vmatpush1.bf16.xpose.msra.mxu0 0
    %615 = vmatprep.subr.bf16.mxu0 0
    %616 = vmatpush1.bf16.xpose.msra.mxu0 0
    %617 = vmatprep.subr.bf16.mxu0 0
    %618 = vmatpush1.bf16.xpose.msra.mxu0 0
    %619 = vmatprep.subr.bf16.mxu0 0
    %620 = vmatpush1.bf16.xpose.msra.mxu0 0
    %621 = vmatprep.subr.bf16.mxu0 0
    %622 = vmatpush1.bf16.xpose.msra.mxu0 0
    %623 = vmatprep.subr.bf16.mxu0 0
    %624 = vmatpush1.bf16.xpose.msra.mxu0 0
    %625 = vmatprep.subr.bf16.mxu0 0
    %626 = vmatpush1.bf16.xpose.msra.mxu0 0
    %627 = vmatprep.subr.bf16.mxu0 0
    %628 = vmatpush1.bf16.xpose.msra.mxu0 0
    %629 = vmatprep.subr.bf16.mxu0 0
    %630 = vmatpush1.bf16.xpose.msra.mxu0 0
    %631 = vmatprep.mubr.bf16.mxu0 0
    %632 = vmatmul.mubr.bf16.gmra.mrb[0].mxu0 %v594
    %v633 = vpop.f32.mrb[0].mxu0
    %v634 = vadd.f32 0.0, %v633
    %v635 = vpop.f32.mrb[0].mxu0
    %v636 = vpop.f32.mrb[0].mxu0
    %v637 = vpop.f32.mrb[0].mxu0
    %638 = vdwg.mxu0
    %v639 = vsel %vm135, %v634, -inf
    %640 = vmax.xlane.f32.xlu0 %v639
    %v641 = vpop.xlane.xlu0 %640
    %v642 = vsub.f32 %v634, %v641
    %v643 = vmul.f32 %v642, 1.442695
    %v644 = vpow.pop %v643
    %v645 = vsel %vm135, %v644, 0.0
    %646 = vadd.xlane.f32.xlu0 %v645
    %v647 = vpop.xlane.xlu0 %646
    %v648 = vrcp.pop %v647
    %v649 = vmul.f32 %v644, %v648
    %v650 = vpack.c.bf16 %v649, %v649
    %651 = vrot.lane.b32.xlu0 %v590, 64
    %v652 = vpop.permute.xlu0 %651
    %v654 = vsel %vm135, %v650, 0
    %v657 = vsel %vm199, %v652, 0
    %659 = vmatprep.subr.bf16.mxu0 0
    %660 = vmatpush1.bf16.msra.mxu0 %v657
    %661 = vmatprep.subr.bf16.mxu0 0
    %662 = vmatpush1.bf16.msra.mxu0 0
    %663 = vmatprep.subr.bf16.mxu0 0
    %664 = vmatpush1.bf16.msra.mxu0 0
    %665 = vmatprep.subr.bf16.mxu0 0
    %666 = vmatpush1.bf16.msra.mxu0 0
    %667 = vmatprep.subr.bf16.mxu0 0
    %668 = vmatpush1.bf16.msra.mxu0 0
    %669 = vmatprep.subr.bf16.mxu0 0
    %670 = vmatpush1.bf16.msra.mxu0 0
    %671 = vmatprep.subr.bf16.mxu0 0
    %672 = vmatpush1.bf16.msra.mxu0 0
    %673 = vmatprep.subr.bf16.mxu0 0
    %674 = vmatpush1.bf16.msra.mxu0 0
    %675 = vmatprep.subr.bf16.mxu0 0
    %676 = vmatpush1.bf16.msra.mxu0 0
    %677 = vmatprep.subr.bf16.mxu0 0
    %678 = vmatpush1.bf16.msra.mxu0 0
    %679 = vmatprep.subr.bf16.mxu0 0
    %680 = vmatpush1.bf16.msra.mxu0 0
    %681 = vmatprep.subr.bf16.mxu0 0
    %682 = vmatpush1.bf16.msra.mxu0 0
    %683 = vmatprep.subr.bf16.mxu0 0
    %684 = vmatpush1.bf16.msra.mxu0 0
    %685 = vmatprep.subr.bf16.mxu0 0
    %686 = vmatpush1.bf16.msra.mxu0 0
    %687 = vmatprep.subr.bf16.mxu0 0
    %688 = vmatpush1.bf16.msra.mxu0 0
    %689 = vmatprep.subr.bf16.mxu0 0
    %690 = vmatpush1.bf16.msra.mxu0 0
    %691 = vmatprep.mubr.bf16.mxu0 0
    %692 = vmatmul.mubr.bf16.gmra.mrb[0].mxu0 %v654
    %v693 = vpop.f32.mrb[0].mxu0
    %v694 = vadd.f32 0.0, %v693
    %v695 = vpop.f32.mrb[0].mxu0
    %v696 = vpop.f32.mrb[0].mxu0
    %v697 = vpop.f32.mrb[0].mxu0
    %698 = vdwg.mxu0
    %699 = vrot.lane.b32.xlu0 %v590, 120
    %v700 = vpop.permute.xlu0 %699
    %701 = vrot.lane.b32.xlu0 %v590, 88
    %v702 = vpop.permute.xlu0 %701
    %v704 = vsel %vm135, %v700, 0
    %v707 = vsel %vm135, %v702, 0
    %709 = vmatprep.subr.bf16.mxu0 0
    %710 = vmatpush1.bf16.xpose.msra.mxu0 %v707
    %711 = vmatprep.subr.bf16.mxu0 0
    %712 = vmatpush1.bf16.xpose.msra.mxu0 0
    %713 = vmatprep.subr.bf16.mxu0 0
    %714 = vmatpush1.bf16.xpose.msra.mxu0 0
    %715 = vmatprep.subr.bf16.mxu0 0
    %716 = vmatpush1.bf16.xpose.msra.mxu0 0
    %717 = vmatprep.subr.bf16.mxu0 0
    %718 = vmatpush1.bf16.xpose.msra.mxu0 0
    %719 = vmatprep.subr.bf16.mxu0 0
    %720 = vmatpush1.bf16.xpose.msra.mxu0 0
    %721 = vmatprep.subr.bf16.mxu0 0
    %722 = vmatpush1.bf16.xpose.msra.mxu0 0
    %723 = vmatprep.subr.bf16.mxu0 0
    %724 = vmatpush1.bf16.xpose.msra.mxu0 0
    %725 = vmatprep.subr.bf16.mxu0 0
    %726 = vmatpush1.bf16.xpose.msra.mxu0 0
    %727 = vmatprep.subr.bf16.mxu0 0
    %728 = vmatpush1.bf16.xpose.msra.mxu0 0
    %729 = vmatprep.subr.bf16.mxu0 0
    %730 = vmatpush1.bf16.xpose.msra.mxu0 0
    %731 = vmatprep.subr.bf16.mxu0 0
    %732 = vmatpush1.bf16.xpose.msra.mxu0 0
    %733 = vmatprep.subr.bf16.mxu0 0
    %734 = vmatpush1.bf16.xpose.msra.mxu0 0
    %735 = vmatprep.subr.bf16.mxu0 0
    %736 = vmatpush1.bf16.xpose.msra.mxu0 0
    %737 = vmatprep.subr.bf16.mxu0 0
    %738 = vmatpush1.bf16.xpose.msra.mxu0 0
    %739 = vmatprep.subr.bf16.mxu0 0
    %740 = vmatpush1.bf16.xpose.msra.mxu0 0
    %741 = vmatprep.mubr.bf16.mxu0 0
    %742 = vmatmul.mubr.bf16.gmra.mrb[0].mxu0 %v704
    %v743 = vpop.f32.mrb[0].mxu0
    %v744 = vadd.f32 0.0, %v743
    %v745 = vpop.f32.mrb[0].mxu0
    %v746 = vpop.f32.mrb[0].mxu0
    %v747 = vpop.f32.mrb[0].mxu0
    %748 = vdwg.mxu0
    %v749 = vsel %vm135, %v744, -inf
    %750 = vmax.xlane.f32.xlu0 %v749
    %v751 = vpop.xlane.xlu0 %750
    %v752 = vsub.f32 %v744, %v751
    %v753 = vmul.f32 %v752, 1.442695
    %v754 = vpow.pop %v753
    %v755 = vsel %vm135, %v754, 0.0
    %756 = vadd.xlane.f32.xlu0 %v755
    %v757 = vpop.xlane.xlu0 %756
    %v758 = vrcp.pop %v757
    %v759 = vmul.f32 %v754, %v758
    %v760 = vpack.c.bf16 %v759, %v759
    %761 = vrot.lane.b32.xlu0 %v590, 56
    %v762 = vpop.permute.xlu0 %761
    %v764 = vsel %vm135, %v760, 0
    %v767 = vsel %vm199, %v762, 0
    %769 = vmatprep.subr.bf16.mxu0 0
    %770 = vmatpush1.bf16.msra.mxu0 %v767
    %771 = vmatprep.subr.bf16.mxu0 0
    %772 = vmatpush1.bf16.msra.mxu0 0
    %773 = vmatprep.subr.bf16.mxu0 0
    %774 = vmatpush1.bf16.msra.mxu0 0
    %775 = vmatprep.subr.bf16.mxu0 0
    %776 = vmatpush1.bf16.msra.mxu0 0
    %777 = vmatprep.subr.bf16.mxu0 0
    %778 = vmatpush1.bf16.msra.mxu0 0
    %779 = vmatprep.subr.bf16.mxu0 0
    %780 = vmatpush1.bf16.msra.mxu0 0
    %781 = vmatprep.subr.bf16.mxu0 0
    %782 = vmatpush1.bf16.msra.mxu0 0
    %783 = vmatprep.subr.bf16.mxu0 0
    %784 = vmatpush1.bf16.msra.mxu0 0
    %785 = vmatprep.subr.bf16.mxu0 0
    %786 = vmatpush1.bf16.msra.mxu0 0
    %787 = vmatprep.subr.bf16.mxu0 0
    %788 = vmatpush1.bf16.msra.mxu0 0
    %789 = vmatprep.subr.bf16.mxu0 0
    %790 = vmatpush1.bf16.msra.mxu0 0
    %791 = vmatprep.subr.bf16.mxu0 0
    %792 = vmatpush1.bf16.msra.mxu0 0
    %793 = vmatprep.subr.bf16.mxu0 0
    %794 = vmatpush1.bf16.msra.mxu0 0
    %795 = vmatprep.subr.bf16.mxu0 0
    %796 = vmatpush1.bf16.msra.mxu0 0
    %797 = vmatprep.subr.bf16.mxu0 0
    %798 = vmatpush1.bf16.msra.mxu0 0
    %799 = vmatprep.subr.bf16.mxu0 0
    %800 = vmatpush1.bf16.msra.mxu0 0
    %801 = vmatprep.mubr.bf16.mxu0 0
    %802 = vmatmul.mubr.bf16.gmra.mrb[0].mxu0 %v764
    %v803 = vpop.f32.mrb[0].mxu0
    %v804 = vadd.f32 0.0, %v803
    %v805 = vpop.f32.mrb[0].mxu0
    %v806 = vpop.f32.mrb[0].mxu0
    %v807 = vpop.f32.mrb[0].mxu0
    %808 = vdwg.mxu0
    %809 = vrot.lane.b32.xlu0 %v590, 112
    %v810 = vpop.permute.xlu0 %809
    %811 = vrot.lane.b32.xlu0 %v590, 80
    %v812 = vpop.permute.xlu0 %811
    %v814 = vsel %vm135, %v810, 0
    %v817 = vsel %vm135, %v812, 0
    %819 = vmatprep.subr.bf16.mxu0 0
    %820 = vmatpush1.bf16.xpose.msra.mxu0 %v817
    %821 = vmatprep.subr.bf16.mxu0 0
    %822 = vmatpush1.bf16.xpose.msra.mxu0 0
    %823 = vmatprep.subr.bf16.mxu0 0
    %824 = vmatpush1.bf16.xpose.msra.mxu0 0
    %825 = vmatprep.subr.bf16.mxu0 0
    %826 = vmatpush1.bf16.xpose.msra.mxu0 0
    %827 = vmatprep.subr.bf16.mxu0 0
    %828 = vmatpush1.bf16.xpose.msra.mxu0 0
    %829 = vmatprep.subr.bf16.mxu0 0
    %830 = vmatpush1.bf16.xpose.msra.mxu0 0
    %831 = vmatprep.subr.bf16.mxu0 0
    %832 = vmatpush1.bf16.xpose.msra.mxu0 0
    %833 = vmatprep.subr.bf16.mxu0 0
    %834 = vmatpush1.bf16.xpose.msra.mxu0 0
    %835 = vmatprep.subr.bf16.mxu0 0
    %836 = vmatpush1.bf16.xpose.msra.mxu0 0
    %837 = vmatprep.subr.bf16.mxu0 0
    %838 = vmatpush1.bf16.xpose.msra.mxu0 0
    %839 = vmatprep.subr.bf16.mxu0 0
    %840 = vmatpush1.bf16.xpose.msra.mxu0 0
    %841 = vmatprep.subr.bf16.mxu0 0
    %842 = vmatpush1.bf16.xpose.msra.mxu0 0
    %843 = vmatprep.subr.bf16.mxu0 0
    %844 = vmatpush1.bf16.xpose.msra.mxu0 0
    %845 = vmatprep.subr.bf16.mxu0 0
    %846 = vmatpush1.bf16.xpose.msra.mxu0 0
    %847 = vmatprep.subr.bf16.mxu0 0
    %848 = vmatpush1.bf16.xpose.msra.mxu0 0
    %849 = vmatprep.subr.bf16.mxu0 0
    %850 = vmatpush1.bf16.xpose.msra.mxu0 0
    %851 = vmatprep.mubr.bf16.mxu0 0
    %852 = vmatmul.mubr.bf16.gmra.mrb[0].mxu0 %v814
    %v853 = vpop.f32.mrb[0].mxu0
    %v854 = vadd.f32 0.0, %v853
    %v855 = vpop.f32.mrb[0].mxu0
    %v856 = vpop.f32.mrb[0].mxu0
    %v857 = vpop.f32.mrb[0].mxu0
    %858 = vdwg.mxu0
    %v859 = vsel %vm135, %v854, -inf
    %860 = vmax.xlane.f32.xlu0 %v859
    %v861 = vpop.xlane.xlu0 %860
    %v862 = vsub.f32 %v854, %v861
    %v863 = vmul.f32 %v862, 1.442695
    %v864 = vpow.pop %v863
    %v865 = vsel %vm135, %v864, 0.0
    %866 = vadd.xlane.f32.xlu0 %v865
    %v867 = vpop.xlane.xlu0 %866
    %v868 = vrcp.pop %v867
    %v869 = vmul.f32 %v864, %v868
    %v870 = vpack.c.bf16 %v869, %v869
    %871 = vrot.lane.b32.xlu0 %v590, 48
    %v872 = vpop.permute.xlu0 %871
    %v874 = vsel %vm135, %v870, 0
    %v877 = vsel %vm199, %v872, 0
    %879 = vmatprep.subr.bf16.mxu0 0
    %880 = vmatpush1.bf16.msra.mxu0 %v877
    %881 = vmatprep.subr.bf16.mxu0 0
    %882 = vmatpush1.bf16.msra.mxu0 0
    %883 = vmatprep.subr.bf16.mxu0 0
    %884 = vmatpush1.bf16.msra.mxu0 0
    %885 = vmatprep.subr.bf16.mxu0 0
    %886 = vmatpush1.bf16.msra.mxu0 0
    %887 = vmatprep.subr.bf16.mxu0 0
    %888 = vmatpush1.bf16.msra.mxu0 0
    %889 = vmatprep.subr.bf16.mxu0 0
    %890 = vmatpush1.bf16.msra.mxu0 0
    %891 = vmatprep.subr.bf16.mxu0 0
    %892 = vmatpush1.bf16.msra.mxu0 0
    %893 = vmatprep.subr.bf16.mxu0 0
    %894 = vmatpush1.bf16.msra.mxu0 0
    %895 = vmatprep.subr.bf16.mxu0 0
    %896 = vmatpush1.bf16.msra.mxu0 0
    %897 = vmatprep.subr.bf16.mxu0 0
    %898 = vmatpush1.bf16.msra.mxu0 0
    %899 = vmatprep.subr.bf16.mxu0 0
    %900 = vmatpush1.bf16.msra.mxu0 0
    %901 = vmatprep.subr.bf16.mxu0 0
    %902 = vmatpush1.bf16.msra.mxu0 0
    %903 = vmatprep.subr.bf16.mxu0 0
    %904 = vmatpush1.bf16.msra.mxu0 0
    %905 = vmatprep.subr.bf16.mxu0 0
    %906 = vmatpush1.bf16.msra.mxu0 0
    %907 = vmatprep.subr.bf16.mxu0 0
    %908 = vmatpush1.bf16.msra.mxu0 0
    %909 = vmatprep.subr.bf16.mxu0 0
    %910 = vmatpush1.bf16.msra.mxu0 0
    %911 = vmatprep.mubr.bf16.mxu0 0
    %912 = vmatmul.mubr.bf16.gmra.mrb[0].mxu0 %v874
    %v913 = vpop.f32.mrb[0].mxu0
    %v914 = vadd.f32 0.0, %v913
    %v915 = vpop.f32.mrb[0].mxu0
    %v916 = vpop.f32.mrb[0].mxu0
    %v917 = vpop.f32.mrb[0].mxu0
    %918 = vdwg.mxu0
    %919 = vrot.lane.b32.xlu0 %v590, 104
    %v920 = vpop.permute.xlu0 %919
    %921 = vrot.lane.b32.xlu0 %v590, 72
    %v922 = vpop.permute.xlu0 %921
    %v924 = vsel %vm135, %v920, 0
    %v927 = vsel %vm135, %v922, 0
    %929 = vmatprep.subr.bf16.mxu0 0
    %930 = vmatpush1.bf16.xpose.msra.mxu0 %v927
    %931 = vmatprep.subr.bf16.mxu0 0
    %932 = vmatpush1.bf16.xpose.msra.mxu0 0
    %933 = vmatprep.subr.bf16.mxu0 0
    %934 = vmatpush1.bf16.xpose.msra.mxu0 0
    %935 = vmatprep.subr.bf16.mxu0 0
    %936 = vmatpush1.bf16.xpose.msra.mxu0 0
    %937 = vmatprep.subr.bf16.mxu0 0
    %938 = vmatpush1.bf16.xpose.msra.mxu0 0
    %939 = vmatprep.subr.bf16.mxu0 0
    %940 = vmatpush1.bf16.xpose.msra.mxu0 0
    %941 = vmatprep.subr.bf16.mxu0 0
    %942 = vmatpush1.bf16.xpose.msra.mxu0 0
    %943 = vmatprep.subr.bf16.mxu0 0
    %944 = vmatpush1.bf16.xpose.msra.mxu0 0
    %945 = vmatprep.subr.bf16.mxu0 0
    %946 = vmatpush1.bf16.xpose.msra.mxu0 0
    %947 = vmatprep.subr.bf16.mxu0 0
    %948 = vmatpush1.bf16.xpose.msra.mxu0 0
    %949 = vmatprep.subr.bf16.mxu0 0
    %950 = vmatpush1.bf16.xpose.msra.mxu0 0
    %951 = vmatprep.subr.bf16.mxu0 0
    %952 = vmatpush1.bf16.xpose.msra.mxu0 0
    %953 = vmatprep.subr.bf16.mxu0 0
    %954 = vmatpush1.bf16.xpose.msra.mxu0 0
    %955 = vmatprep.subr.bf16.mxu0 0
    %956 = vmatpush1.bf16.xpose.msra.mxu0 0
    %957 = vmatprep.subr.bf16.mxu0 0
    %958 = vmatpush1.bf16.xpose.msra.mxu0 0
    %959 = vmatprep.subr.bf16.mxu0 0
    %960 = vmatpush1.bf16.xpose.msra.mxu0 0
    %961 = vmatprep.mubr.bf16.mxu0 0
    %962 = vmatmul.mubr.bf16.gmra.mrb[0].mxu0 %v924
    %v963 = vpop.f32.mrb[0].mxu0
    %v964 = vadd.f32 0.0, %v963
    %v965 = vpop.f32.mrb[0].mxu0
    %v966 = vpop.f32.mrb[0].mxu0
    %v967 = vpop.f32.mrb[0].mxu0
    %968 = vdwg.mxu0
    %v969 = vsel %vm135, %v964, -inf
    %970 = vmax.xlane.f32.xlu0 %v969
    %v971 = vpop.xlane.xlu0 %970
    %v972 = vsub.f32 %v964, %v971
    %v973 = vmul.f32 %v972, 1.442695
    %v974 = vpow.pop %v973
    %v975 = vsel %vm135, %v974, 0.0
    %976 = vadd.xlane.f32.xlu0 %v975
    %v977 = vpop.xlane.xlu0 %976
    %v978 = vrcp.pop %v977
    %v979 = vmul.f32 %v974, %v978
    %v980 = vpack.c.bf16 %v979, %v979
    %981 = vrot.lane.b32.xlu0 %v590, 40
    %v982 = vpop.permute.xlu0 %981
    %v984 = vsel %vm135, %v980, 0
    %v987 = vsel %vm199, %v982, 0
    %989 = vmatprep.subr.bf16.mxu0 0
    %990 = vmatpush1.bf16.msra.mxu0 %v987
    %991 = vmatprep.subr.bf16.mxu0 0
    %992 = vmatpush1.bf16.msra.mxu0 0
    %993 = vmatprep.subr.bf16.mxu0 0
    %994 = vmatpush1.bf16.msra.mxu0 0
    %995 = vmatprep.subr.bf16.mxu0 0
    %996 = vmatpush1.bf16.msra.mxu0 0
    %997 = vmatprep.subr.bf16.mxu0 0
    %998 = vmatpush1.bf16.msra.mxu0 0
    %999 = vmatprep.subr.bf16.mxu0 0
    %1000 = vmatpush1.bf16.msra.mxu0 0
    %1001 = vmatprep.subr.bf16.mxu0 0
    %1002 = vmatpush1.bf16.msra.mxu0 0
    %1003 = vmatprep.subr.bf16.mxu0 0
    %1004 = vmatpush1.bf16.msra.mxu0 0
    %1005 = vmatprep.subr.bf16.mxu0 0
    %1006 = vmatpush1.bf16.msra.mxu0 0
    %1007 = vmatprep.subr.bf16.mxu0 0
    %1008 = vmatpush1.bf16.msra.mxu0 0
    %1009 = vmatprep.subr.bf16.mxu0 0
    %1010 = vmatpush1.bf16.msra.mxu0 0
    %1011 = vmatprep.subr.bf16.mxu0 0
    %1012 = vmatpush1.bf16.msra.mxu0 0
    %1013 = vmatprep.subr.bf16.mxu0 0
    %1014 = vmatpush1.bf16.msra.mxu0 0
    %1015 = vmatprep.subr.bf16.mxu0 0
    %1016 = vmatpush1.bf16.msra.mxu0 0
    %1017 = vmatprep.subr.bf16.mxu0 0
    %1018 = vmatpush1.bf16.msra.mxu0 0
    %1019 = vmatprep.subr.bf16.mxu0 0
    %1020 = vmatpush1.bf16.msra.mxu0 0
    %1021 = vmatprep.mubr.bf16.mxu0 0
    %1022 = vmatmul.mubr.bf16.gmra.mrb[0].mxu0 %v984
    %v1023 = vpop.f32.mrb[0].mxu0
    %v1024 = vadd.f32 0.0, %v1023
    %v1025 = vpop.f32.mrb[0].mxu0
    %v1026 = vpop.f32.mrb[0].mxu0
    %v1027 = vpop.f32.mrb[0].mxu0
    %1028 = vdwg.mxu0
    %1030 = vrot.lane.b32.xlu0 %v804, 8
    %v1031 = vpop.permute.xlu0 %1030
    %1034 = vrot.lane.b32.xlu0 %v914, 16
    %v1035 = vpop.permute.xlu0 %1034
    %1038 = vrot.lane.b32.xlu0 %v1024, 24
    %v1039 = vpop.permute.xlu0 %1038
    %v1041 = vsel %vm135, %v694, %v1031
    %v1042 = vsel %vm586, %v1041, %v1035
    %v1043 = vsel %vm588, %v1042, %v1039
    %v1044 = vpack.c.bf16 %v1043, %v589
    %v1045 = vld [vmem:[%s3] sm:$0xf]
    %v1046 = vld [vmem:[%s3 + $0x4] sm:$0xf]
    %v1047 = vld [vmem:[%s3 + $0x8] sm:$0xf]
    %v1048 = vld [vmem:[%s3 + $0xc] sm:$0xf]
    %v1049 = vld [vmem:[%s4] sm:$0x1]
    %v1051 = vlaneseq
    %v1052 = vshrl.u32 %v1051, 7
    %v1053 = vsub.s32 0, %v1052
    %v1054 = vrot.slane %v1049, %v1053
    %v1060 = vunpack.c.l.b16 %v1045
    %v1061 = vunpack.c.l.b16 %v1046
    %v1062 = vunpack.c.l.b16 %v1047
    %v1063 = vunpack.c.l.b16 %v1048
    %v1064 = vpack.c.b16 %v1061, %v1060
    %v1065 = vpack.c.b16 %v1063, %v1062
    %v1069 = vsel %vm86, %v1044, 0
    %1071 = vmatprep.subr.bf16.mxu0 0
    %1072 = vmatpush1.bf16.msra.mxu0 %v1064
    %1073 = vmatprep.subr.bf16.mxu0 0
    %1074 = vmatpush1.bf16.msra.mxu0 %v1065
    %1075 = vmatprep.subr.bf16.mxu0 0
    %1076 = vmatpush1.bf16.msra.mxu0 0
    %1077 = vmatprep.subr.bf16.mxu0 0
    %1078 = vmatpush1.bf16.msra.mxu0 0
    %1079 = vmatprep.subr.bf16.mxu0 0
    %1080 = vmatpush1.bf16.msra.mxu0 0
    %1081 = vmatprep.subr.bf16.mxu0 0
    %1082 = vmatpush1.bf16.msra.mxu0 0
    %1083 = vmatprep.subr.bf16.mxu0 0
    %1084 = vmatpush1.bf16.msra.mxu0 0
    %1085 = vmatprep.subr.bf16.mxu0 0
    %1086 = vmatpush1.bf16.msra.mxu0 0
    %1087 = vmatprep.subr.bf16.mxu0 0
    %1088 = vmatpush1.bf16.msra.mxu0 0
    %1089 = vmatprep.subr.bf16.mxu0 0
    %1090 = vmatpush1.bf16.msra.mxu0 0
    %1091 = vmatprep.subr.bf16.mxu0 0
    %1092 = vmatpush1.bf16.msra.mxu0 0
    %1093 = vmatprep.subr.bf16.mxu0 0
    %1094 = vmatpush1.bf16.msra.mxu0 0
    %1095 = vmatprep.subr.bf16.mxu0 0
    %1096 = vmatpush1.bf16.msra.mxu0 0
    %1097 = vmatprep.subr.bf16.mxu0 0
    %1098 = vmatpush1.bf16.msra.mxu0 0
    %1099 = vmatprep.subr.bf16.mxu0 0
    %1100 = vmatpush1.bf16.msra.mxu0 0
    %1101 = vmatprep.subr.bf16.mxu0 0
    %1102 = vmatpush1.bf16.msra.mxu0 0
    %1103 = vmatprep.mubr.bf16.mxu0 0
    %1104 = vmatmul.mubr.bf16.gmra.mrb[0].mxu0 %v1069
    %v1105 = vpop.f32.mrb[0].mxu0
    %v1106 = vadd.f32 %v1054, %v1105
    %v1107 = vpop.f32.mrb[0].mxu0
    %v1108 = vpop.f32.mrb[0].mxu0
    %v1109 = vadd.f32 %v1054, %v1108
    %v1110 = vpop.f32.mrb[0].mxu0
    %1111 = vdwg.mxu0
    %v1112 = vadd.f32 %v60, %v1106
    %v1113 = vadd.f32 %v61, %v1109
    %v1114 = vsel %vm86, %v1112, 0.0
    %1115 = vadd.xlane.f32.xlu0 %v1114
    %v1116 = vpop.xlane.xlu0 %1115
    %v1117 = vsel %vm86, %v1113, 0.0
    %1118 = vadd.xlane.f32.xlu0 %v1117
    %v1119 = vpop.xlane.xlu0 %1118
    %v1120 = vrcp.pop 32.0
    %v1121 = vmul.f32 %v1116, %v1120
    %v1122 = vmul.f32 %v1119, %v1120
    %v1123 = vsub.f32 %v1112, %v1121
    %v1124 = vsub.f32 %v1113, %v1122
    %v1125 = vmul.f32 %v1123, %v1123
    %v1126 = vmul.f32 %v1124, %v1124
    %v1127 = vsel %vm86, %v1125, 0.0
    %1128 = vadd.xlane.f32.xlu0 %v1127
    %v1129 = vpop.xlane.xlu0 %1128
    %v1130 = vsel %vm86, %v1126, 0.0
    %1131 = vadd.xlane.f32.xlu0 %v1130
    %v1132 = vpop.xlane.xlu0 %1131
    %v1133 = vmul.f32 %v1129, %v1120
    %v1134 = vmul.f32 %v1132, %v1120
    %v1135 = vadd.f32 %v1133, 1e-05
    %v1136 = vadd.f32 %v1134, 1e-05
    %v1137 = vrsqrt.pop %v1135
    %v1138 = vrsqrt.pop %v1136
    %v1139 = vmul.f32 %v1123, %v1137
    %v1140 = vmul.f32 %v1124, %v1138
    %v1141 = vld [vmem:[%s5] sm:$0x1]
    %v1143 = vlaneseq
    %v1144 = vshrl.u32 %v1143, 7
    %v1145 = vsub.s32 0, %v1144
    %v1146 = vrot.slane %v1141, %v1145
    %v1148 = vmul.f32 %v1139, %v1146
    %v1149 = vmul.f32 %v1140, %v1146
    %v1150 = vld [vmem:[%s6] sm:$0x1]
    %v1152 = vlaneseq
    %v1153 = vshrl.u32 %v1152, 7
    %v1154 = vsub.s32 0, %v1153
    %v1155 = vrot.slane %v1150, %v1154
    %v1157 = vadd.f32 %v1148, %v1155
    %v1158 = vadd.f32 %v1149, %v1155
    %v1159 = vpack.c.bf16 %v1158, %v1157
    %v1160 = vld [vmem:[#allocation2] sm:$0xf]
    %v1161 = vld [vmem:[#allocation2 + $0x4] sm:$0xf]
    %v1162 = vld [vmem:[#allocation2 + $0x8] sm:$0xf]
    %v1163 = vld [vmem:[#allocation2 + $0xc] sm:$0xf]
    %v1164 = vld [vmem:[%s8] sm:$0x1]
    %v1166 = vlaneseq
    %v1167 = vshrl.u32 %v1166, 7
    %v1168 = vsub.s32 0, %v1167
    %v1169 = vrot.slane %v1164, %v1168
    %v1175 = vunpack.c.l.b16 %v1160
    %v1176 = vunpack.c.l.b16 %v1161
    %v1177 = vunpack.c.l.b16 %v1162
    %v1178 = vunpack.c.l.b16 %v1163
    %v1179 = vpack.c.b16 %v1176, %v1175
    %v1180 = vpack.c.b16 %v1178, %v1177
    %v1184 = vsel %vm86, %v1159, 0
    %1186 = vmatprep.subr.bf16.mxu0 0
    %1187 = vmatpush1.bf16.msra.mxu0 %v1179
    %1188 = vmatprep.subr.bf16.mxu0 0
    %1189 = vmatpush1.bf16.msra.mxu0 %v1180
    %1190 = vmatprep.subr.bf16.mxu0 0
    %1191 = vmatpush1.bf16.msra.mxu0 0
    %1192 = vmatprep.subr.bf16.mxu0 0
    %1193 = vmatpush1.bf16.msra.mxu0 0
    %1194 = vmatprep.subr.bf16.mxu0 0
    %1195 = vmatpush1.bf16.msra.mxu0 0
    %1196 = vmatprep.subr.bf16.mxu0 0
    %1197 = vmatpush1.bf16.msra.mxu0 0
    %1198 = vmatprep.subr.bf16.mxu0 0
    %1199 = vmatpush1.bf16.msra.mxu0 0
    %1200 = vmatprep.subr.bf16.mxu0 0
    %1201 = vmatpush1.bf16.msra.mxu0 0
    %1202 = vmatprep.subr.bf16.mxu0 0
    %1203 = vmatpush1.bf16.msra.mxu0 0
    %1204 = vmatprep.subr.bf16.mxu0 0
    %1205 = vmatpush1.bf16.msra.mxu0 0
    %1206 = vmatprep.subr.bf16.mxu0 0
    %1207 = vmatpush1.bf16.msra.mxu0 0
    %1208 = vmatprep.subr.bf16.mxu0 0
    %1209 = vmatpush1.bf16.msra.mxu0 0
    %1210 = vmatprep.subr.bf16.mxu0 0
    %1211 = vmatpush1.bf16.msra.mxu0 0
    %1212 = vmatprep.subr.bf16.mxu0 0
    %1213 = vmatpush1.bf16.msra.mxu0 0
    %1214 = vmatprep.subr.bf16.mxu0 0
    %1215 = vmatpush1.bf16.msra.mxu0 0
    %1216 = vmatprep.subr.bf16.mxu0 0
    %1217 = vmatpush1.bf16.msra.mxu0 0
    %1218 = vmatprep.mubr.bf16.mxu0 0
    %1219 = vmatmul.mubr.bf16.gmra.mrb[0].mxu0 %v1184
    %v1220 = vpop.f32.mrb[0].mxu0
    %v1221 = vadd.f32 %v1169, %v1220
    %v1222 = vpop.f32.mrb[0].mxu0
    %v1223 = vpop.f32.mrb[0].mxu0
    %v1224 = vadd.f32 %v1169, %v1223
    %v1225 = vpop.f32.mrb[0].mxu0
    %1226 = vdwg.mxu0
    %v1227 = vmax.f32 %v1221, 0.0
    %v1228 = vmax.f32 %v1224, 0.0
    %v1229 = vpack.c.bf16 %v1228, %v1227
    %v1230 = vld [vmem:[%s9] sm:$0xf]
    %v1231 = vld [vmem:[%s9 + $0x4] sm:$0xf]
    %v1232 = vld [vmem:[%s9 + $0x8] sm:$0xf]
    %v1233 = vld [vmem:[%s9 + $0xc] sm:$0xf]
    %v1234 = vld [vmem:[%s9 + $0x10] sm:$0xf]
    %v1235 = vld [vmem:[%s9 + $0x14] sm:$0xf]
    %v1236 = vld [vmem:[%s9 + $0x18] sm:$0xf]
    %v1237 = vld [vmem:[%s9 + $0x1c] sm:$0xf]
    %v1238 = vld [vmem:[%s10] sm:$0x1]
    %v1240 = vlaneseq
    %v1241 = vshrl.u32 %v1240, 7
    %v1242 = vsub.s32 0, %v1241
    %v1243 = vrot.slane %v1238, %v1242
    %v1253 = vunpack.c.l.b16 %v1230
    %v1254 = vunpack.c.l.b16 %v1231
    %v1255 = vunpack.c.l.b16 %v1232
    %v1256 = vunpack.c.l.b16 %v1233
    %v1257 = vunpack.c.l.b16 %v1234
    %v1258 = vunpack.c.l.b16 %v1235
    %v1259 = vunpack.c.l.b16 %v1236
    %v1260 = vunpack.c.l.b16 %v1237
    %v1261 = vpack.c.b16 %v1254, %v1253
    %v1262 = vpack.c.b16 %v1256, %v1255
    %v1263 = vpack.c.b16 %v1258, %v1257
    %v1264 = vpack.c.b16 %v1260, %v1259
    %vm1269 = vcmask 523264
    %v1271 = vsel %vm1269, %v1229, 0
    %1273 = vmatprep.subr.bf16.mxu0 0
    %1274 = vmatpush1.bf16.msra.mxu0 %v1261
    %1275 = vmatprep.subr.bf16.mxu0 0
    %1276 = vmatpush1.bf16.msra.mxu0 %v1262
    %1277 = vmatprep.subr.bf16.mxu0 0
    %1278 = vmatpush1.bf16.msra.mxu0 %v1263
    %1279 = vmatprep.subr.bf16.mxu0 0
    %1280 = vmatpush1.bf16.msra.mxu0 %v1264
    %1281 = vmatprep.subr.bf16.mxu0 0
    %1282 = vmatpush1.bf16.msra.mxu0 0
    %1283 = vmatprep.subr.bf16.mxu0 0
    %1284 = vmatpush1.bf16.msra.mxu0 0
    %1285 = vmatprep.subr.bf16.mxu0 0
    %1286 = vmatpush1.bf16.msra.mxu0 0
    %1287 = vmatprep.subr.bf16.mxu0 0
    %1288 = vmatpush1.bf16.msra.mxu0 0
    %1289 = vmatprep.subr.bf16.mxu0 0
    %1290 = vmatpush1.bf16.msra.mxu0 0
    %1291 = vmatprep.subr.bf16.mxu0 0
    %1292 = vmatpush1.bf16.msra.mxu0 0
    %1293 = vmatprep.subr.bf16.mxu0 0
    %1294 = vmatpush1.bf16.msra.mxu0 0
    %1295 = vmatprep.subr.bf16.mxu0 0
    %1296 = vmatpush1.bf16.msra.mxu0 0
    %1297 = vmatprep.subr.bf16.mxu0 0
    %1298 = vmatpush1.bf16.msra.mxu0 0
    %1299 = vmatprep.subr.bf16.mxu0 0
    %1300 = vmatpush1.bf16.msra.mxu0 0
    %1301 = vmatprep.subr.bf16.mxu0 0
    %1302 = vmatpush1.bf16.msra.mxu0 0
    %1303 = vmatprep.subr.bf16.mxu0 0
    %1304 = vmatpush1.bf16.msra.mxu0 0
    %1305 = vmatprep.mubr.bf16.mxu0 0
    %1306 = vmatmul.mubr.bf16.gmra.mrb[0].mxu0 %v1271
    %v1307 = vpop.f32.mrb[0].mxu0
    %v1308 = vadd.f32 %v1243, %v1307
    %v1309 = vpop.f32.mrb[0].mxu0
    %v1310 = vpop.f32.mrb[0].mxu0
    %v1311 = vadd.f32 %v1243, %v1310
    %v1312 = vpop.f32.mrb[0].mxu0
    %1313 = vdwg.mxu0
    %v1314 = vadd.f32 %v1157, %v1308
    %v1315 = vadd.f32 %v1158, %v1311
    %v1316 = vsel %vm86, %v1314, 0.0
    %1317 = vadd.xlane.f32.xlu0 %v1316
    %v1318 = vpop.xlane.xlu0 %1317
    %v1319 = vsel %vm86, %v1315, 0.0
    %1320 = vadd.xlane.f32.xlu0 %v1319
    %v1321 = vpop.xlane.xlu0 %1320
    %v1322 = vmul.f32 %v1318, %v1120
    %v1323 = vmul.f32 %v1321, %v1120
    %v1324 = vsub.f32 %v1314, %v1322
    %v1325 = vsub.f32 %v1315, %v1323
    %v1326 = vmul.f32 %v1324, %v1324
    %v1327 = vmul.f32 %v1325, %v1325
    %v1328 = vsel %vm86, %v1326, 0.0
    %1329 = vadd.xlane.f32.xlu0 %v1328
    %v1330 = vpop.xlane.xlu0 %1329
    %v1331 = vsel %vm86, %v1327, 0.0
    %1332 = vadd.xlane.f32.xlu0 %v1331
    %v1333 = vpop.xlane.xlu0 %1332
    %v1334 = vmul.f32 %v1330, %v1120
    %v1335 = vmul.f32 %v1333, %v1120
    %v1336 = vadd.f32 %v1334, 1e-05
    %v1337 = vadd.f32 %v1335, 1e-05
    %v1338 = vrsqrt.pop %v1336
    %v1339 = vrsqrt.pop %v1337
    %v1340 = vmul.f32 %v1324, %v1338
    %v1341 = vmul.f32 %v1325, %v1339
    %v1342 = vld [vmem:[%s11] sm:$0x1]
    %v1344 = vlaneseq
    %v1345 = vshrl.u32 %v1344, 7
    %v1346 = vsub.s32 0, %v1345
    %v1347 = vrot.slane %v1342, %v1346
    %v1349 = vmul.f32 %v1340, %v1347
    %v1350 = vmul.f32 %v1341, %v1347
    %v1351 = vld [vmem:[%s12] sm:$0x1]
    %v1353 = vlaneseq
    %v1354 = vshrl.u32 %v1353, 7
    %v1355 = vsub.s32 0, %v1354
    %v1356 = vrot.slane %v1351, %v1355
    %v1358 = vadd.f32 %v1349, %v1356
    %v1359 = vadd.f32 %v1350, %v1356
    %1360 = vst.msk [vmem:[#allocation5] sm:$0xff] %vm86, %v1358
    %1361 = vst.msk [vmem:[#allocation5 + $0x8] sm:$0xff] %vm86, %v1359
    // Predicated region
    $region58: #{tpu_custom_call.1} parent=1 // pred_check
      _
    $region59: #{tpu_custom_call.1} parent=1 // pred_check_branch
      %1363 = sbr.rel (0) target = $region61
    $region60: #{tpu_custom_call.1} parent=1 // pred_region
      %s1365 = ssub.s32 256, 256
      %1366 = vsyncadd [#allocation4], %s1365
      %s1367 = sshll.u32 [#allocation5], 4
      %s1368 = int_to_ptr.vmem [resolvable:$true] %s1367
      %1373 = dma.vmem_to_hbm [thread:$0]  %s1368, 256, %s13, [#allocation4], 128, 128, 8
    $region61: #{tpu_custom_call.1} parent=1 // pred_fallthru
      _
    // Predicated region
    $region62: #{tpu_custom_call.1} parent=1 // pred_check
      _
    $region63: #{tpu_custom_call.1} parent=1 // pred_check_branch
      %1375 = sbr.rel (0) target = $region65
    $region64: #{tpu_custom_call.1} parent=1 // pred_region
      %1376 = dma.done [#allocation4], 256
    $region65: #{tpu_custom_call.1} parent=1 // pred_fallthru
      _
    %1377 = vsyncpa [#allocation3], 1
    %1378 = vsyncpa [#allocation4], 1

</llo_original>
